<compile_context>
chip_gen: v7x
topology: tpu7x:2x2x1
jax: 0.10.0
libtpu: 0.0.40
codegen_flags: <defaults>
</compile_context>

<pallas_src>
import math

import jax
import jax.numpy as jnp
import numpy as np
from jax.experimental import pallas as pl
from jax.experimental.pallas import tpu as pltpu

_NEG_INF = -1e30


# ---------------------------------------------------------------------------
# helpers
# ---------------------------------------------------------------------------
def _pick_tile(dim, candidates):
    for c in candidates:
        if dim % c == 0:
            return c
    return dim


# ---------------------------------------------------------------------------
# kernel bodies
# ---------------------------------------------------------------------------
def _make_qkv_kernel(head_dim, n_rep):
    half = head_dim // 2

    def kernel(x_ref, w_ref, cos_ref, sin_ref, q_ref, k_ref, v_ref):
        # x: (1, TS, D); w: (1, D, (n_rep+2)*hd) -- [q heads | k | v], rotate-half
        # column order for q/k, softmax scale folded into the q columns.
        x = x_ref[0]
        t = jnp.dot(x, w_ref[0], preferred_element_type=jnp.float32)  # (TS, (nr+2)*hd)
        cos = cos_ref[...]
        sin = sin_ref[...]

        def rope(seg):  # seg: (TS, hd) f32, lane-aligned slice (hd = 128-multiple)
            return seg * cos + pltpu.roll(seg, half, 1) * sin

        for r in range(n_rep):
            seg = t[:, r * head_dim:(r + 1) * head_dim]
            q_ref[0, r] = rope(seg).astype(q_ref.dtype)
        kseg = t[:, n_rep * head_dim:(n_rep + 1) * head_dim]
        k_ref[0, 0] = rope(kseg).astype(k_ref.dtype)
        v_ref[0, 0] = t[:, (n_rep + 1) * head_dim:(n_rep + 2) * head_dim].astype(v_ref.dtype)

    return kernel


def _make_flash_kernel(tq, tk, n_rep, head_dim):
    rows_m = n_rep * tq

    def kernel(q_ref, k_ref, v_ref, o_ref, m_sc, l_sc, acc_sc):
        qi = pl.program_id(2)
        ki = pl.program_id(3)

        @pl.when(ki == 0)
        def _init():
            m_sc[...] = jnp.full_like(m_sc, -jnp.inf)
            l_sc[...] = jnp.zeros_like(l_sc)
            acc_sc[...] = jnp.zeros_like(acc_sc)

        q_first_row = qi * tq
        q_last_row = qi * tq + (tq - 1)
        k_first_col = ki * tk
        k_last_col = ki * tk + (tk - 1)
        is_valid = k_first_col <= q_last_row          # tile has >=1 visible key
        needs_mask = k_last_col > q_first_row         # tile straddles the diagonal

        def scores():
            # (n_rep, TQ, hd) -> (n_rep*TQ, hd): all query heads of this KV group
            q = q_ref[0].reshape(rows_m, head_dim)    # scale pre-folded into Wq
            k = k_ref[0, 0]                           # (TK, hd)
            return jax.lax.dot_general(q, k, (((1,), (1,)), ((), ())),
                                       preferred_element_type=jnp.float32)

        def update(s):
            m_prev = m_sc[...]
            m_new = jnp.maximum(m_prev, jnp.max(s, axis=-1, keepdims=True))
            alpha = jnp.exp(m_prev - m_new)
            p = jnp.exp(s - m_new)
            l_sc[...] = alpha * l_sc[...] + jnp.sum(p, axis=-1, keepdims=True)
            acc_sc[...] = alpha * acc_sc[...] + jnp.dot(
                p.astype(v_ref.dtype), v_ref[0, 0], preferred_element_type=jnp.float32)
            m_sc[...] = m_new

        # Diagonal-straddling tiles: build the causal mask in-kernel (no HBM mask).
        @pl.when(jnp.logical_and(is_valid, needs_mask))
        def _masked():
            s = scores()
            rows = q_first_row + (
                jax.lax.broadcasted_iota(jnp.int32, (rows_m, tk), 0) % tq)
            cols = k_first_col + jax.lax.broadcasted_iota(jnp.int32, (rows_m, tk), 1)
            update(jnp.where(rows >= cols, s, _NEG_INF))

        # Fully visible tiles: mask-free fast path (no iota / compare / select).
        @pl.when(jnp.logical_and(is_valid, jnp.logical_not(needs_mask)))
        def _unmasked():
            update(scores())

        @pl.when(ki == pl.num_programs(3) - 1)
        def _finalize():
            inv_l = pl.reciprocal(l_sc[...], approx=False)
            o_ref[0] = (acc_sc[...] * inv_l).reshape(
                n_rep, tq, head_dim).astype(o_ref.dtype)

    return kernel


def _make_out_proj_kernel(kh):
    def kernel(y_ref, w_ref, o_ref, acc_ref):
        # y: (1, KH, TM, hd) context slab (read directly in (B,H,S,hd) layout),
        # w: (KH, hd, TN) slice of Wo^T; heads are the contraction axis.
        @pl.when(pl.program_id(3) == 0)
        def _init():
            acc_ref[...] = jnp.zeros_like(acc_ref)

        acc = acc_ref[...]
        for r in range(kh):
            acc = acc + jnp.dot(y_ref[0, r], w_ref[r],
                                preferred_element_type=jnp.float32)
        acc_ref[...] = acc

        @pl.when(pl.program_id(3) == pl.num_programs(3) - 1)
        def _store():
            o_ref[0] = acc_ref[...].astype(o_ref.dtype)

    return kernel


# ---------------------------------------------------------------------------
# wrapper
# ---------------------------------------------------------------------------
def attention_forward(x, wq, wk, wv, wo, freqs_cis,
                      n_heads, n_kv_heads, head_dim, attention_scale=None,
                      block_q=128, block_k=512, block_s=256):
    """x: (B, S, D); wq/wk/wv/wo in PyTorch Linear layout (out_features, in_features);
       freqs_cis: (S, head_dim//2, 2) = (cos, sin). Causal mask generated in-kernel.
       block_q is per-group; GQA folding makes the effective score-matmul M =
       n_rep*block_q, so 128 with n_rep>=2 already fills the 256-wide MXU on v6e/v7x."""
    B, S, D = x.shape
    assert n_heads % n_kv_heads == 0
    n_rep = n_heads // n_kv_heads
    half = head_dim // 2
    scale = attention_scale if attention_scale is not None else 1.0 / math.sqrt(head_dim)
    dt = x.dtype

    TQ = min(block_q, S)
    TK = min(block_k, S)
    TS = min(block_s, S)
    assert S % TQ == 0 and S % TK == 0 and S % TS == 0, "seq len must divide tile sizes"

    # ---- host-side weight prep: rotate-half column order, per-KV-group slabs ----
    perm = np.concatenate([np.arange(0, head_dim, 2), np.arange(1, head_dim, 2)])

    def qk_heads(w, nh, s):
        w3 = w.reshape(nh, head_dim, D)[:, perm, :]           # rotate-half channel order
        return (jnp.transpose(w3, (0, 2, 1)) * s).astype(dt)  # (nh, D, hd)

    wq_h = qk_heads(wq, n_heads, scale)            # softmax scale folded into Wq
    wk_h = qk_heads(wk, n_kv_heads, 1.0)
    wv_h = jnp.transpose(wv.reshape(n_kv_heads, head_dim, D), (0, 2, 1)).astype(dt)

    # per-KV-group fused slab: [q_{g*nr} .. q_{(g+1)*nr-1} | k_g | v_g]
    wq_g = wq_h.reshape(n_kv_heads, n_rep, D, head_dim)
    wq_g = jnp.transpose(wq_g, (0, 2, 1, 3)).reshape(n_kv_heads, D, n_rep * head_dim)
    w_slab = jnp.concatenate([wq_g, wk_h, wv_h], axis=-1)     # (KV, D, (nr+2)*hd)
    qkv_width = (n_rep + 2) * head_dim

    wo3 = wo.T.astype(dt).reshape(n_heads, head_dim, D)       # (H, hd, D)

    cos = freqs_cis[..., 0].astype(jnp.float32)               # (S, hd//2)
    sin = freqs_cis[..., 1].astype(jnp.float32)
    cos_rh = jnp.concatenate([cos, cos], axis=-1)             # (S, hd)
    sin_rh = jnp.concatenate([-sin, sin], axis=-1)            # sign folded into sin

    # ---- 1) fused QKV projection + RoPE (x streamed KV passes, not H+KV) ----
    q, k, v = pl.pallas_call(
        _make_qkv_kernel(head_dim, n_rep),
        out_shape=(jax.ShapeDtypeStruct((B, n_heads, S, head_dim), dt),
                   jax.ShapeDtypeStruct((B, n_kv_heads, S, head_dim), dt),
                   jax.ShapeDtypeStruct((B, n_kv_heads, S, head_dim), dt)),
        grid_spec=pltpu.PrefetchScalarGridSpec(
            num_scalar_prefetch=0,
            grid=(B, n_kv_heads, S // TS),          # s innermost -> slab stays resident
            in_specs=[
                pl.BlockSpec((1, TS, D), lambda b, g, s: (b, s, 0)),
                pl.BlockSpec((1, D, qkv_width), lambda b, g, s: (g, 0, 0)),
                pl.BlockSpec((TS, head_dim), lambda b, g, s: (s, 0)),
                pl.BlockSpec((TS, head_dim), lambda b, g, s: (s, 0)),
            ],
            out_specs=(
                pl.BlockSpec((1, n_rep, TS, head_dim), lambda b, g, s: (b, g, s, 0)),
                pl.BlockSpec((1, 1, TS, head_dim), lambda b, g, s: (b, g, s, 0)),
                pl.BlockSpec((1, 1, TS, head_dim), lambda b, g, s: (b, g, s, 0)),
            ),
        ),
        compiler_params=pltpu.CompilerParams(
            dimension_semantics=("parallel", "parallel", "parallel"),
            # large group slabs (big D / n_rep) can exceed the 32 MiB scoped default;
            # 48 MiB keeps headroom even on v7x's 64 MiB physical VMEM.
            vmem_limit_bytes=48 * 1024 * 1024),
    )(x, w_slab, cos_rh, sin_rh)

    # ---- 2) flash attention: GQA folding + causal-clamped K/V index_map ----
    def kv_index_map(b, g, qi, ki):
        # clamp: fully-masked kv tiles reuse the previous block index -> no DMA.
        return (b, g, jnp.minimum(ki, (qi * TQ + TQ - 1) // TK), 0)

    ctx = pl.pallas_call(
        _make_flash_kernel(TQ, TK, n_rep, head_dim),
        out_shape=jax.ShapeDtypeStruct((B, n_heads, S, head_dim), dt),
        grid_spec=pltpu.PrefetchScalarGridSpec(
            num_scalar_prefetch=0,
            grid=(B, n_kv_heads, S // TQ, S // TK),
            in_specs=[
                pl.BlockSpec((1, n_rep, TQ, head_dim),
                             lambda b, g, qi, ki: (b, g, qi, 0)),
                pl.BlockSpec((1, 1, TK, head_dim), kv_index_map),
                pl.BlockSpec((1, 1, TK, head_dim), kv_index_map),
            ],
            out_specs=pl.BlockSpec((1, n_rep, TQ, head_dim),
                                   lambda b, g, qi, ki: (b, g, qi, 0)),
            scratch_shapes=[pltpu.VMEM((n_rep * TQ, 1), jnp.float32),
                            pltpu.VMEM((n_rep * TQ, 1), jnp.float32),
                            pltpu.VMEM((n_rep * TQ, head_dim), jnp.float32)],
        ),
        compiler_params=pltpu.CompilerParams(
            dimension_semantics=("parallel", "parallel", "parallel", "arbitrary")),
    )(q, k, v)

    # ---- 3) output projection: heads folded into the contraction axis ----
    # Reads ctx directly in (B, H, S, hd) layout -> no host transpose / HBM round trip.
    TM = _pick_tile(S, (512, 256, 128, 64, 32, 16, 8))
    TN = _pick_tile(D, (512, 256, 128))
    KH = _pick_tile(n_heads, (8, 4, 2, 1))
    out = pl.pallas_call(
        _make_out_proj_kernel(KH),
        out_shape=jax.ShapeDtypeStruct((B, S, D), dt),
        grid_spec=pltpu.PrefetchScalarGridSpec(
            num_scalar_prefetch=0,
            grid=(B, S // TM, D // TN, n_heads // KH),
            in_specs=[
                pl.BlockSpec((1, KH, TM, head_dim), lambda b, m, n, h: (b, h, m, 0)),
                pl.BlockSpec((KH, head_dim, TN), lambda b, m, n, h: (h, 0, n)),
            ],
            out_specs=pl.BlockSpec((1, TM, TN), lambda b, m, n, h: (b, m, n)),
            scratch_shapes=[pltpu.VMEM((TM, TN), jnp.float32)],
        ),
        compiler_params=pltpu.CompilerParams(
            dimension_semantics=("parallel", "parallel", "parallel", "arbitrary")),
    )(ctx, wo3)

    return out


# ---------------------------------------------------------------------------
# pure-JAX reference (replica of the PyTorch Attention.forward, kv_cache=None)
# ---------------------------------------------------------------------------
def reference_forward(x, wq, wk, wv, wo, freqs_cis,
                      n_heads, n_kv_heads, head_dim, attention_scale=None):
    B, S, D = x.shape
    q = x @ wq.T
    k = x @ wk.T
    v = x @ wv.T
    q = q.reshape(B, S, n_heads, head_dim)
    k = k.reshape(B, S, n_kv_heads, head_dim)
    v = v.reshape(B, S, n_kv_heads, head_dim)

    def rope(t):
        ts = t.reshape(*t.shape[:-1], -1, 2)
        fc = freqs_cis.reshape(1, S, 1, head_dim // 2, 2)
        out = jnp.stack([ts[..., 0] * fc[..., 0] - ts[..., 1] * fc[..., 1],
                         ts[..., 1] * fc[..., 0] + ts[..., 0] * fc[..., 1]], axis=-1)
        return out.reshape(t.shape)

    q = rope(q).transpose(0, 2, 1, 3)
    k = rope(k).transpose(0, 2, 1, 3)
    v = v.transpose(0, 2, 1, 3)
    n_rep = n_heads // n_kv_heads
    if n_rep > 1:
        k = jnp.repeat(k, n_rep, axis=1)   # repeat_interleave(dim=1)
        v = jnp.repeat(v, n_rep, axis=1)
    scale = attention_scale if attention_scale is not None else 1.0 / math.sqrt(head_dim)
    s = jnp.einsum('bhqd,bhkd->bhqk', q, k) * scale
    mask = jnp.tril(jnp.ones((S, S), dtype=jnp.bool_))
    s = jnp.where(mask[None, None], s, -1e30)
    p = jax.nn.softmax(s, axis=-1)
    y = jnp.einsum('bhqk,bhkd->bhqd', p, v)
    y = y.transpose(0, 2, 1, 3).reshape(B, S, D)
    return y @ wo.T


if __name__ == "__main__":
    # small config consistent with TransformerArgs semantics (head_dim = dim // n_heads)
    B, S = 2, 256
    dim = 512
    n_heads = 4
    n_kv_heads = 2                 # n_local_heads (GQA), n_rep = 2
    head_dim = dim // n_heads      # 128
    rope_base = 10000.0

    key = jax.random.PRNGKey(0)
    kx, kq, kk, kv, ko = jax.random.split(key, 5)
    x = jax.random.normal(kx, (B, S, dim), jnp.float32)
    # deterministic "Linear" weights, PyTorch layout (out_features, in_features), bias=False
    wq = jax.random.normal(kq, (n_heads * head_dim, dim), jnp.float32) * 0.05
    wk = jax.random.normal(kk, (n_kv_heads * head_dim, dim), jnp.float32) * 0.05
    wv = jax.random.normal(kv, (n_kv_heads * head_dim, dim), jnp.float32) * 0.05
    wo = jax.random.normal(ko, (dim, dim), jnp.float32) * 0.05

    # Llama-style rotary table, shape (S, head_dim//2, 2) = (cos, sin)
    inv_freq = 1.0 / (rope_base ** (np.arange(0, head_dim, 2, dtype=np.float32) / head_dim))
    t = np.arange(S, dtype=np.float32)
    ang = np.outer(t, inv_freq)
    freqs_cis = jnp.asarray(np.stack([np.cos(ang), np.sin(ang)], axis=-1), dtype=jnp.float32)

    # small tiles so the causal clamp / straddle / full-visible paths are all exercised
    y = attention_forward(x, wq, wk, wv, wo, freqs_cis,
                          n_heads, n_kv_heads, head_dim,
                          block_q=64, block_k=64, block_s=64)
    jax.block_until_ready(y)

    y_ref = reference_forward(x, wq, wk, wv, wo, freqs_cis,
                              n_heads, n_kv_heads, head_dim)
    err = float(np.max(np.abs(np.asarray(y) - np.asarray(y_ref))))
    assert np.allclose(np.asarray(y), np.asarray(y_ref), rtol=1e-2, atol=1e-2), f"max err {err}"

    print("KERNEL_OK")
</pallas_src>

<mosaic_0001>
module attributes {stable_mosaic.version = 11 : i64} {
  func.func @kernel(%arg0: i32, %arg1: i32, %arg2: i32, %arg3: memref<1x64x512xf32, #tpu.memory_space<vmem>>, %arg4: memref<1x512x512xf32, #tpu.memory_space<vmem>>, %arg5: memref<64x128xf32, #tpu.memory_space<vmem>>, %arg6: memref<64x128xf32, #tpu.memory_space<vmem>>, %arg7: memref<1x2x64x128xf32, #tpu.memory_space<vmem>>, %arg8: memref<1x1x64x128xf32, #tpu.memory_space<vmem>>, %arg9: memref<1x1x64x128xf32, #tpu.memory_space<vmem>>) attributes {dimension_semantics = [#tpu.dimension_semantics<parallel>, #tpu.dimension_semantics<parallel>, #tpu.dimension_semantics<parallel>], iteration_bounds = array<i64: 2, 2, 4>, scalar_prefetch = 0 : i64, scratch_operands = 0 : i64, tpu.core_type = #tpu.core_type<tc>, window_params = [{transform_indices = @transform_0, window_bounds = array<i64: 1, 64, 512>}, {transform_indices = @transform_1, window_bounds = array<i64: 1, 512, 512>}, {transform_indices = @transform_2, window_bounds = array<i64: 64, 128>}, {transform_indices = @transform_3, window_bounds = array<i64: 64, 128>}, {transform_indices = @transform_4, window_bounds = array<i64: 1, 2, 64, 128>}, {transform_indices = @transform_5, window_bounds = array<i64: 1, 1, 64, 128>}, {transform_indices = @transform_6, window_bounds = array<i64: 1, 1, 64, 128>}]} {
    %c0 = arith.constant 0 : index
    %c0_0 = arith.constant 0 : index
    %c0_1 = arith.constant 0 : index
    %0 = vector.load %arg3[%c0, %c0_0, %c0_1] : memref<1x64x512xf32, #tpu.memory_space<vmem>>, vector<1x64x512xf32>
    %1 = vector.shape_cast %0 : vector<1x64x512xf32> to vector<64x512xf32>
    %c0_2 = arith.constant 0 : index
    %c0_3 = arith.constant 0 : index
    %c0_4 = arith.constant 0 : index
    %2 = vector.load %arg4[%c0_2, %c0_3, %c0_4] : memref<1x512x512xf32, #tpu.memory_space<vmem>>, vector<1x512x512xf32>
    %3 = vector.shape_cast %2 : vector<1x512x512xf32> to vector<512x512xf32>
    %cst = arith.constant dense<0.000000e+00> : vector<64x512xf32>
    %4 = tpu.matmul %1, %3, %cst {dimension_numbers = #tpu.dot_dimension_numbers<[1], [0], [0], [1], [0, 0, 1, 1], [], []>} : vector<64x512xf32>, vector<512x512xf32>, vector<64x512xf32> -> vector<64x512xf32>
    %c0_5 = arith.constant 0 : index
    %c0_6 = arith.constant 0 : index
    %5 = vector.load %arg5[%c0_5, %c0_6] : memref<64x128xf32, #tpu.memory_space<vmem>>, vector<64x128xf32>
    %c0_7 = arith.constant 0 : index
    %c0_8 = arith.constant 0 : index
    %6 = vector.load %arg6[%c0_7, %c0_8] : memref<64x128xf32, #tpu.memory_space<vmem>>, vector<64x128xf32>
    %7 = vector.extract_strided_slice %4 {offsets = [0, 0], sizes = [64, 128], strides = [1, 1]} : vector<64x512xf32> to vector<64x128xf32>
    %8 = arith.mulf %7, %5 : vector<64x128xf32>
    %c64_i32 = arith.constant 64 : i32
    %9 = tpu.dynamic_rotate %7 by %c64_i32 dim 1 : vector<64x128xf32>, i32 -> vector<64x128xf32>
    %10 = arith.mulf %9, %6 : vector<64x128xf32>
    %11 = arith.addf %8, %10 : vector<64x128xf32>
    %c0_9 = arith.constant 0 : index
    %c0_10 = arith.constant 0 : index
    %c0_11 = arith.constant 0 : index
    %c0_12 = arith.constant 0 : index
    %12 = vector.load %arg7[%c0_9, %c0_10, %c0_11, %c0_12] : memref<1x2x64x128xf32, #tpu.memory_space<vmem>>, vector<1x1x64x128xf32>
    %13 = vector.shape_cast %12 : vector<1x1x64x128xf32> to vector<64x128xf32>
    %14 = vector.shape_cast %11 : vector<64x128xf32> to vector<1x1x64x128xf32>
    tpu.vector_store %arg7[%c0_9, %c0_10, %c0_11, %c0_12], %14 {strides = array<i32>} : memref<1x2x64x128xf32, #tpu.memory_space<vmem>>, vector<1x1x64x128xf32>,
    %15 = vector.extract_strided_slice %4 {offsets = [0, 128], sizes = [64, 128], strides = [1, 1]} : vector<64x512xf32> to vector<64x128xf32>
    %16 = arith.mulf %15, %5 : vector<64x128xf32>
    %c64_i32_13 = arith.constant 64 : i32
    %17 = tpu.dynamic_rotate %15 by %c64_i32_13 dim 1 : vector<64x128xf32>, i32 -> vector<64x128xf32>
    %18 = arith.mulf %17, %6 : vector<64x128xf32>
    %19 = arith.addf %16, %18 : vector<64x128xf32>
    %c0_14 = arith.constant 0 : index
    %c1 = arith.constant 1 : index
    %c0_15 = arith.constant 0 : index
    %c0_16 = arith.constant 0 : index
    %20 = vector.load %arg7[%c0_14, %c1, %c0_15, %c0_16] : memref<1x2x64x128xf32, #tpu.memory_space<vmem>>, vector<1x1x64x128xf32>
    %21 = vector.shape_cast %20 : vector<1x1x64x128xf32> to vector<64x128xf32>
    %22 = vector.shape_cast %19 : vector<64x128xf32> to vector<1x1x64x128xf32>
    tpu.vector_store %arg7[%c0_14, %c1, %c0_15, %c0_16], %22 {strides = array<i32>} : memref<1x2x64x128xf32, #tpu.memory_space<vmem>>, vector<1x1x64x128xf32>,
    %23 = vector.extract_strided_slice %4 {offsets = [0, 256], sizes = [64, 128], strides = [1, 1]} : vector<64x512xf32> to vector<64x128xf32>
    %24 = arith.mulf %23, %5 : vector<64x128xf32>
    %c64_i32_17 = arith.constant 64 : i32
    %25 = tpu.dynamic_rotate %23 by %c64_i32_17 dim 1 : vector<64x128xf32>, i32 -> vector<64x128xf32>
    %26 = arith.mulf %25, %6 : vector<64x128xf32>
    %27 = arith.addf %24, %26 : vector<64x128xf32>
    %c0_18 = arith.constant 0 : index
    %c0_19 = arith.constant 0 : index
    %c0_20 = arith.constant 0 : index
    %c0_21 = arith.constant 0 : index
    %28 = vector.load %arg8[%c0_18, %c0_19, %c0_20, %c0_21] : memref<1x1x64x128xf32, #tpu.memory_space<vmem>>, vector<1x1x64x128xf32>
    %29 = vector.shape_cast %28 : vector<1x1x64x128xf32> to vector<64x128xf32>
    %30 = vector.shape_cast %27 : vector<64x128xf32> to vector<1x1x64x128xf32>
    tpu.vector_store %arg8[%c0_18, %c0_19, %c0_20, %c0_21], %30 {strides = array<i32>} : memref<1x1x64x128xf32, #tpu.memory_space<vmem>>, vector<1x1x64x128xf32>,
    %31 = vector.extract_strided_slice %4 {offsets = [0, 384], sizes = [64, 128], strides = [1, 1]} : vector<64x512xf32> to vector<64x128xf32>
    %c0_22 = arith.constant 0 : index
    %c0_23 = arith.constant 0 : index
    %c0_24 = arith.constant 0 : index
    %c0_25 = arith.constant 0 : index
    %32 = vector.load %arg9[%c0_22, %c0_23, %c0_24, %c0_25] : memref<1x1x64x128xf32, #tpu.memory_space<vmem>>, vector<1x1x64x128xf32>
    %33 = vector.shape_cast %32 : vector<1x1x64x128xf32> to vector<64x128xf32>
    %34 = vector.shape_cast %31 : vector<64x128xf32> to vector<1x1x64x128xf32>
    tpu.vector_store %arg9[%c0_22, %c0_23, %c0_24, %c0_25], %34 {strides = array<i32>} : memref<1x1x64x128xf32, #tpu.memory_space<vmem>>, vector<1x1x64x128xf32>,
    return
  }
  func.func @transform_0(%arg0: i32, %arg1: i32, %arg2: i32) -> (i32, i32, i32) {
    %c0_i32 = arith.constant 0 : i32
    %c0_i32_0 = arith.constant 0 : i32
    return %arg0, %arg2, %c0_i32 : i32, i32, i32
  }
  func.func @transform_1(%arg0: i32, %arg1: i32, %arg2: i32) -> (i32, i32, i32) {
    %c0_i32 = arith.constant 0 : i32
    %c0_i32_0 = arith.constant 0 : i32
    %c0_i32_1 = arith.constant 0 : i32
    return %arg1, %c0_i32, %c0_i32_0 : i32, i32, i32
  }
  func.func @transform_2(%arg0: i32, %arg1: i32, %arg2: i32) -> (i32, i32) {
    %c0_i32 = arith.constant 0 : i32
    %c0_i32_0 = arith.constant 0 : i32
    return %arg2, %c0_i32 : i32, i32
  }
  func.func @transform_3(%arg0: i32, %arg1: i32, %arg2: i32) -> (i32, i32) {
    %c0_i32 = arith.constant 0 : i32
    %c0_i32_0 = arith.constant 0 : i32
    return %arg2, %c0_i32 : i32, i32
  }
  func.func @transform_4(%arg0: i32, %arg1: i32, %arg2: i32) -> (i32, i32, i32, i32) {
    %c0_i32 = arith.constant 0 : i32
    %c0_i32_0 = arith.constant 0 : i32
    return %arg0, %arg1, %arg2, %c0_i32 : i32, i32, i32, i32
  }
  func.func @transform_5(%arg0: i32, %arg1: i32, %arg2: i32) -> (i32, i32, i32, i32) {
    %c0_i32 = arith.constant 0 : i32
    %c0_i32_0 = arith.constant 0 : i32
    return %arg0, %arg1, %arg2, %c0_i32 : i32, i32, i32, i32
  }
  func.func @transform_6(%arg0: i32, %arg1: i32, %arg2: i32) -> (i32, i32, i32, i32) {
    %c0_i32 = arith.constant 0 : i32
    %c0_i32_0 = arith.constant 0 : i32
    return %arg0, %arg1, %arg2, %c0_i32 : i32, i32, i32, i32
  }
}

</mosaic_0001>

<llo_original>
// kernel: tpu_custom_call.1
$region0: #{tpu_custom_call.1}
  #allocation0 [shape = 'u32[]', space=smem, size = 0x4, offset = 0x4, fixed_abs, tag = 'smem constant byte address 0x4 - core index']
  #allocation1 [shape = 'u32[144,128]{1,0:T(1,128)}', space=vmem, size = 0x12000, scoped, tag = 'internal scratch']
  #allocation14 [shape = 's32[]', space=sflag, size = 0x4, offset = 0, fixed_abs, tag = 'sflag constant byte address 0x0 - dummy sync flag']
  %s0 = inlined_call_operand.hbm [shape: f32[2,256,512], index: 0, kind: input, shape index: {}]
  %s1 = inlined_call_operand.hbm [shape: f32[2,512,512], index: 1, kind: input, shape index: {}]
  %s2 = inlined_call_operand.hbm [shape: f32[256,128], index: 2, kind: input, shape index: {}]
  %s3 = inlined_call_operand.hbm [shape: f32[256,128], index: 3, kind: input, shape index: {}]
  %s4 = inlined_call_operand.hbm [shape: f32[2,4,256,128], index: 4, kind: output, shape index: {0}]
  %s5 = inlined_call_operand.hbm [shape: f32[2,2,256,128], index: 5, kind: output, shape index: {1}]
  %s6 = inlined_call_operand.hbm [shape: f32[2,2,256,128], index: 6, kind: output, shape index: {2}]
  %7 = xla_tuple %s4, %s5, %s6
  %s8 = sld [smem:[#allocation0]]
  $region81: #{tpu_custom_call.1} parent=0
    _
  %s10 = ssub.s32 1, %s8
  %s11 = scalar_select 0, %s10, %s8
  $region1: #{tpu_custom_call.1} parent=0
    #allocation2 [shape = 'u8[262144]{0}', space=vmem, size = 0x40000, scoped, tag = 'input window, operand 0']
    #allocation3 [shape = 's32[2]{0}', space=sflag, size = 0x8, scoped, tag = 'scoped memory for tpu_custom_call.1']
    #allocation4 [shape = 's32[2]{0}', space=sflag, size = 0x8, scoped, tag = 'scoped memory for tpu_custom_call.1']
    #allocation5 [shape = 'u8[2097152]{0}', space=vmem, size = 0x200000, scoped, tag = 'input window, operand 1']
    #allocation6 [shape = 's32[2]{0}', space=sflag, size = 0x8, scoped, tag = 'scoped memory for tpu_custom_call.1']
    #allocation7 [shape = 'u8[65536]{0}', space=vmem, size = 0x10000, scoped, tag = 'input window, operand 2']
    #allocation8 [shape = 'u8[65536]{0}', space=vmem, size = 0x10000, scoped, tag = 'input window, operand 3']
    #allocation9 [shape = 's32[2]{0}', space=sflag, size = 0x8, scoped, tag = 'scoped memory for tpu_custom_call.1']
    #allocation10 [shape = 'u8[131072]{0}', space=vmem, size = 0x20000, scoped, tag = 'output window, operand 0']
    #allocation11 [shape = 'u8[65536]{0}', space=vmem, size = 0x10000, scoped, tag = 'output window, operand 1']
    #allocation12 [shape = 's32[2]{0}', space=sflag, size = 0x8, scoped, tag = 'scoped memory for tpu_custom_call.1']
    #allocation13 [shape = 'u8[65536]{0}', space=vmem, size = 0x10000, scoped, tag = 'output window, operand 2']
    %12 = vsyncpa [#allocation3], 0
    %s13 = scalar_lea.sflag [#allocation3], 1
    %14 = vsyncpa %s13, 0
    %15 = vsyncpa [#allocation6], 0
    %s16 = scalar_lea.sflag [#allocation6], 1
    %17 = vsyncpa %s16, 0
    %18 = vsyncpa [#allocation9], 0
    %s19 = scalar_lea.sflag [#allocation9], 1
    %20 = vsyncpa %s19, 0
    %21 = vsyncpa [#allocation4], 0
    %s22 = scalar_lea.sflag [#allocation4], 1
    %23 = vsyncpa %s22, 0
    %24 = vsyncpa [#allocation12], 0
    %s25 = scalar_lea.sflag [#allocation12], 1
    %26 = vsyncpa %s25, 0
    loop: start=0, step=1, limit=18
    $region2: #{tpu_custom_call.1} parent=1 // loop_pre_header
      _
    $region3: #{tpu_custom_call.1} parent=1 // loop_header
      %s28 = sphi 0, %s32
      %p29 = scmp.ge.s32.totalorder %s28, 18
      %s35 = sphi 0, %s54
      %s36 = sphi 0, %s50
      %s37 = sphi 0, %s46
      %s38 = sphi 0, %s35
      %s39 = sphi 0, %s36
      %s40 = sphi 0, %s37
      %s41 = sphi 0, %s38
      %s42 = sphi 0, %s39
      %s43 = sphi 0, %s40
      %s59 = sphi 0, %s61
      %s62 = sphi 0, %s59
      %s63 = sphi 0, %s62
      %s79 = sphi 0, %s63
      %s85 = sphi 0, %s87
      %s88 = sphi 0, %s85
      %s89 = sphi 0, %s88
      %s105 = sphi 0, %s89
      %s111 = sphi 0, %s113
      %s114 = sphi 0, %s111
      %s115 = sphi 0, %s114
      %s131 = sphi 0, %s115
      %s137 = sphi 0, %s139
      %s140 = sphi 0, %s137
      %s141 = sphi 0, %s140
      %s157 = sphi 0, %s141
      %s167 = sphi 0, %s169
      %s170 = sphi 0, %s167
      %s171 = sphi 0, %s170
      %s187 = sphi 0, %s171
      %s197 = sphi 0, %s199
      %s200 = sphi 0, %s197
      %s201 = sphi 0, %s200
      %s217 = sphi 0, %s201
      %s227 = sphi 0, %s229
      %s230 = sphi 0, %s227
      %s231 = sphi 0, %s230
      %s247 = sphi 0, %s231
    $region4: #{tpu_custom_call.1} parent=1 // loop_header_branch
      %31 = sbr.rel (%p29) target = $region8
    $region5: #{tpu_custom_call.1} parent=1 // loop_body
      %s33 = ssub.s32 %s28, 1
      %s34 = ssub.s32 %s28, 2
      %s44 = sadd.s32 1, %s37
      %p45 = scmp.ge.s32.totalorder %s44, 4
      %s46 = scalar_select %p45, 0, %s44
      %s47 = sadd.s32 1, %s36
      %s48 = scalar_select %p45, %s47, %s36
      %p49 = scmp.ge.s32.totalorder %s48, 2
      %s50 = scalar_select %p49, 0, %s48
      %s51 = sadd.s32 1, %s35
      %s52 = scalar_select %p49, %s51, %s35
      %p53 = scmp.ge.s32.totalorder %s52, 2
      %s54 = scalar_select %p53, 0, %s52
      %s55 = ssub.s32 %s35, %s54
      %s56 = ssub.s32 %s37, %s46
      %s57 = sor.u32 %s55, %s56
      %p58 = scmp.eq.s32.totalorder %s57, 0
      %s60 = sadd.s32 %s59, 1
      %s61 = scalar_select %p58, %s59, %s60
      %p64 = pneg %p58
      %p65 = scmp.eq.s32.totalorder %s28, 15
      %p66 = por %p64, %p65
      %p67 = scmp.ne.s32.totalorder %s59, %s62
      %p68 = scmp.eq.s32.totalorder %s28, 0
      %p69 = por %p67, %p68
      %p70 = scmp.ne.s32.totalorder %s59, %s62
      %p71 = scmp.eq.s32.totalorder %s33, 15
      %p72 = por %p70, %p71
      %p73 = scmp.ne.s32.totalorder %s62, %s63
      %p74 = scmp.eq.s32.totalorder %s33, 0
      %p75 = por %p73, %p74
      %p76 = scmp.ne.s32.totalorder %s62, %s63
      %p77 = scmp.eq.s32.totalorder %s34, 15
      %p78 = por %p76, %p77
      %p80 = scmp.ne.s32.totalorder %s63, %s79
      %p81 = scmp.eq.s32.totalorder %s34, 0
      %p82 = por %p80, %p81
      %s83 = ssub.s32 %s36, %s50
      %p84 = scmp.eq.s32.totalorder %s83, 0
      %s86 = sadd.s32 %s85, 1
      %s87 = scalar_select %p84, %s85, %s86
      %p90 = pneg %p84
      %p91 = scmp.eq.s32.totalorder %s28, 15
      %p92 = por %p90, %p91
      %p93 = scmp.ne.s32.totalorder %s85, %s88
      %p94 = scmp.eq.s32.totalorder %s28, 0
      %p95 = por %p93, %p94
      %p96 = scmp.ne.s32.totalorder %s85, %s88
      %p97 = scmp.eq.s32.totalorder %s33, 15
      %p98 = por %p96, %p97
      %p99 = scmp.ne.s32.totalorder %s88, %s89
      %p100 = scmp.eq.s32.totalorder %s33, 0
      %p101 = por %p99, %p100
      %p102 = scmp.ne.s32.totalorder %s88, %s89
      %p103 = scmp.eq.s32.totalorder %s34, 15
      %p104 = por %p102, %p103
      %p106 = scmp.ne.s32.totalorder %s89, %s105
      %p107 = scmp.eq.s32.totalorder %s34, 0
      %p108 = por %p106, %p107
      %s109 = ssub.s32 %s37, %s46
      %p110 = scmp.eq.s32.totalorder %s109, 0
      %s112 = sadd.s32 %s111, 1
      %s113 = scalar_select %p110, %s111, %s112
      %p116 = pneg %p110
      %p117 = scmp.eq.s32.totalorder %s28, 15
      %p118 = por %p116, %p117
      %p119 = scmp.ne.s32.totalorder %s111, %s114
      %p120 = scmp.eq.s32.totalorder %s28, 0
      %p121 = por %p119, %p120
      %p122 = scmp.ne.s32.totalorder %s111, %s114
      %p123 = scmp.eq.s32.totalorder %s33, 15
      %p124 = por %p122, %p123
      %p125 = scmp.ne.s32.totalorder %s114, %s115
      %p126 = scmp.eq.s32.totalorder %s33, 0
      %p127 = por %p125, %p126
      %p128 = scmp.ne.s32.totalorder %s114, %s115
      %p129 = scmp.eq.s32.totalorder %s34, 15
      %p130 = por %p128, %p129
      %p132 = scmp.ne.s32.totalorder %s115, %s131
      %p133 = scmp.eq.s32.totalorder %s34, 0
      %p134 = por %p132, %p133
      %s135 = ssub.s32 %s37, %s46
      %p136 = scmp.eq.s32.totalorder %s135, 0
      %s138 = sadd.s32 %s137, 1
      %s139 = scalar_select %p136, %s137, %s138
      %p142 = pneg %p136
      %p143 = scmp.eq.s32.totalorder %s28, 15
      %p144 = por %p142, %p143
      %p145 = scmp.ne.s32.totalorder %s137, %s140
      %p146 = scmp.eq.s32.totalorder %s28, 0
      %p147 = por %p145, %p146
      %p148 = scmp.ne.s32.totalorder %s137, %s140
      %p149 = scmp.eq.s32.totalorder %s33, 15
      %p150 = por %p148, %p149
      %p151 = scmp.ne.s32.totalorder %s140, %s141
      %p152 = scmp.eq.s32.totalorder %s33, 0
      %p153 = por %p151, %p152
      %p154 = scmp.ne.s32.totalorder %s140, %s141
      %p155 = scmp.eq.s32.totalorder %s34, 15
      %p156 = por %p154, %p155
      %p158 = scmp.ne.s32.totalorder %s141, %s157
      %p159 = scmp.eq.s32.totalorder %s34, 0
      %p160 = por %p158, %p159
      %s161 = ssub.s32 %s35, %s54
      %s162 = ssub.s32 %s36, %s50
      %s163 = sor.u32 %s161, %s162
      %s164 = ssub.s32 %s37, %s46
      %s165 = sor.u32 %s163, %s164
      %p166 = scmp.eq.s32.totalorder %s165, 0
      %s168 = sadd.s32 %s167, 1
      %s169 = scalar_select %p166, %s167, %s168
      %p172 = pneg %p166
      %p173 = scmp.eq.s32.totalorder %s28, 15
      %p174 = por %p172, %p173
      %p175 = scmp.ne.s32.totalorder %s167, %s170
      %p176 = scmp.eq.s32.totalorder %s28, 0
      %p177 = por %p175, %p176
      %p178 = scmp.ne.s32.totalorder %s167, %s170
      %p179 = scmp.eq.s32.totalorder %s33, 15
      %p180 = por %p178, %p179
      %p181 = scmp.ne.s32.totalorder %s170, %s171
      %p182 = scmp.eq.s32.totalorder %s33, 0
      %p183 = por %p181, %p182
      %p184 = scmp.ne.s32.totalorder %s170, %s171
      %p185 = scmp.eq.s32.totalorder %s34, 15
      %p186 = por %p184, %p185
      %p188 = scmp.ne.s32.totalorder %s171, %s187
      %p189 = scmp.eq.s32.totalorder %s34, 0
      %p190 = por %p188, %p189
      %s191 = ssub.s32 %s35, %s54
      %s192 = ssub.s32 %s36, %s50
      %s193 = sor.u32 %s191, %s192
      %s194 = ssub.s32 %s37, %s46
      %s195 = sor.u32 %s193, %s194
      %p196 = scmp.eq.s32.totalorder %s195, 0
      %s198 = sadd.s32 %s197, 1
      %s199 = scalar_select %p196, %s197, %s198
      %p202 = pneg %p196
      %p203 = scmp.eq.s32.totalorder %s28, 15
      %p204 = por %p202, %p203
      %p205 = scmp.ne.s32.totalorder %s197, %s200
      %p206 = scmp.eq.s32.totalorder %s28, 0
      %p207 = por %p205, %p206
      %p208 = scmp.ne.s32.totalorder %s197, %s200
      %p209 = scmp.eq.s32.totalorder %s33, 15
      %p210 = por %p208, %p209
      %p211 = scmp.ne.s32.totalorder %s200, %s201
      %p212 = scmp.eq.s32.totalorder %s33, 0
      %p213 = por %p211, %p212
      %p214 = scmp.ne.s32.totalorder %s200, %s201
      %p215 = scmp.eq.s32.totalorder %s34, 15
      %p216 = por %p214, %p215
      %p218 = scmp.ne.s32.totalorder %s201, %s217
      %p219 = scmp.eq.s32.totalorder %s34, 0
      %p220 = por %p218, %p219
      %s221 = ssub.s32 %s35, %s54
      %s222 = ssub.s32 %s36, %s50
      %s223 = sor.u32 %s221, %s222
      %s224 = ssub.s32 %s37, %s46
      %s225 = sor.u32 %s223, %s224
      %p226 = scmp.eq.s32.totalorder %s225, 0
      %s228 = sadd.s32 %s227, 1
      %s229 = scalar_select %p226, %s227, %s228
      %p232 = pneg %p226
      %p233 = scmp.eq.s32.totalorder %s28, 15
      %p234 = por %p232, %p233
      %p235 = scmp.ne.s32.totalorder %s227, %s230
      %p236 = scmp.eq.s32.totalorder %s28, 0
      %p237 = por %p235, %p236
      %p238 = scmp.ne.s32.totalorder %s227, %s230
      %p239 = scmp.eq.s32.totalorder %s33, 15
      %p240 = por %p238, %p239
      %p241 = scmp.ne.s32.totalorder %s230, %s231
      %p242 = scmp.eq.s32.totalorder %s33, 0
      %p243 = por %p241, %p242
      %p244 = scmp.ne.s32.totalorder %s230, %s231
      %p245 = scmp.eq.s32.totalorder %s34, 15
      %p246 = por %p244, %p245
      %p248 = scmp.ne.s32.totalorder %s231, %s247
      %p249 = scmp.eq.s32.totalorder %s34, 0
      %p250 = por %p248, %p249
      %p251 = scmp.le.s32.totalorder 1, %s28
      %p252 = scmp.lt.s32.totalorder %s28, 17
      %p253 = pnand %p251, %p252
      %p254 = pneg %p253
      // Predicated region
      $region9: #{tpu_custom_call.1} parent=5 // pred_check
        _
      $region10: #{tpu_custom_call.1} parent=5 // pred_check_branch
        %256 = sbr.rel (%p253) target = $region12
      $region11: #{tpu_custom_call.1} parent=5 // pred_region
        %s257 = ssub.s32 %s28, 1
      $region12: #{tpu_custom_call.1} parent=5 // pred_fallthru
        _
      %p258 = scmp.lt.s32.totalorder %s28, 16
      // Predicated region
      $region13: #{tpu_custom_call.1} parent=5 // pred_check
        %p259 = pneg %p258
      $region14: #{tpu_custom_call.1} parent=5 // pred_check_branch
        %261 = sbr.rel (%p259) target = $region16
      $region15: #{tpu_custom_call.1} parent=5 // pred_region
        // Predicated region
        $region17: #{tpu_custom_call.1} parent=15 // pred_check
          %p262 = pneg %p69
        $region18: #{tpu_custom_call.1} parent=15 // pred_check_branch
          %264 = sbr.rel (%p262) target = $region20
        $region19: #{tpu_custom_call.1} parent=15 // pred_region
          %s265 = sand.u32 %s59, 1
          %s266 = scalar_lea.sflag [#allocation3], %s265
          %s267 = sand.u32 %s59, 1
          %s268 = smul.addr %s267, 256
          %s269 = scalar_lea.vmem [#allocation2], %s268
          %s270 = smul.u32 8, %s37
          %s272 = ssub.s32 4096, 4096
          %273 = vsyncadd %s266, %s272
          %s274 = smul.addr %s270, 4
          %s275 = smul.addr %s35, 128
          %s276 = sadd.s32 %s274, %s275
          %s277 = smul.addr %s276, 128
          %s278 = scalar_lea.hbm %s0, %s277
          %s279 = sshll.u32 %s269, 4
          %s280 = int_to_ptr.vmem [resolvable:$true] %s279
          %285 = dma.hbm_to_vmem [thread:$0]  %s278, 4096, %s280, %s266, 512, 512, 32
        $region20: #{tpu_custom_call.1} parent=15 // pred_fallthru
          _
        // Predicated region
        $region21: #{tpu_custom_call.1} parent=15 // pred_check
          %p286 = pneg %p95
        $region22: #{tpu_custom_call.1} parent=15 // pred_check_branch
          %288 = sbr.rel (%p286) target = $region24
        $region23: #{tpu_custom_call.1} parent=15 // pred_region
          %s289 = sand.u32 %s28, 1
          %s290 = scalar_lea.sflag [#allocation6], %s289
          %s291 = sand.u32 %s85, 1
          %s292 = smul.addr %s291, 2048
          %s293 = scalar_lea.vmem [#allocation5], %s292
          %s295 = ssub.s32 32768, 32768
          %296 = vsyncadd %s290, %s295
          %s297 = smul.addr %s36, 256
          %s298 = smul.addr %s297, 128
          %s299 = scalar_lea.hbm %s1, %s298
          %s300 = sshll.u32 %s293, 4
          %s301 = int_to_ptr.vmem [resolvable:$true] %s300
          %306 = dma.hbm_to_vmem [thread:$0]  %s299, 32768, %s301, %s290, 512, 512, 32
        $region24: #{tpu_custom_call.1} parent=15 // pred_fallthru
          _
        // Predicated region
        $region25: #{tpu_custom_call.1} parent=15 // pred_check
          %p307 = pneg %p121
        $region26: #{tpu_custom_call.1} parent=15 // pred_check_branch
          %309 = sbr.rel (%p307) target = $region28
        $region27: #{tpu_custom_call.1} parent=15 // pred_region
          %s310 = sand.u32 %s28, 1
          %s311 = scalar_lea.sflag [#allocation6], %s310
          %s312 = sand.u32 %s111, 1
          %s313 = smul.addr %s312, 64
          %s314 = scalar_lea.vmem [#allocation7], %s313
          %s315 = smul.u32 8, %s37
          %s317 = ssub.s32 1024, 1024
          %318 = vsyncadd %s311, %s317
          %s319 = smul.addr %s315, 128
          %s320 = scalar_lea.hbm %s2, %s319
          %s321 = sshll.u32 %s314, 4
          %s322 = int_to_ptr.vmem [resolvable:$true] %s321
          %327 = dma.hbm_to_vmem [thread:$0]  %s320, 1024, %s322, %s311, 128, 128, 8
        $region28: #{tpu_custom_call.1} parent=15 // pred_fallthru
          _
        // Predicated region
        $region29: #{tpu_custom_call.1} parent=15 // pred_check
          %p328 = pneg %p147
        $region30: #{tpu_custom_call.1} parent=15 // pred_check_branch
          %330 = sbr.rel (%p328) target = $region32
        $region31: #{tpu_custom_call.1} parent=15 // pred_region
          %s331 = sand.u32 %s137, 1
          %s332 = scalar_lea.sflag [#allocation9], %s331
          %s333 = sand.u32 %s137, 1
          %s334 = smul.addr %s333, 64
          %s335 = scalar_lea.vmem [#allocation8], %s334
          %s336 = smul.u32 8, %s37
          %s338 = ssub.s32 1024, 1024
          %339 = vsyncadd %s332, %s338
          %s340 = smul.addr %s336, 128
          %s341 = scalar_lea.hbm %s3, %s340
          %s342 = sshll.u32 %s335, 4
          %s343 = int_to_ptr.vmem [resolvable:$true] %s342
          %348 = dma.hbm_to_vmem [thread:$0]  %s341, 1024, %s343, %s332, 128, 128, 8
        $region32: #{tpu_custom_call.1} parent=15 // pred_fallthru
          _
      $region16: #{tpu_custom_call.1} parent=5 // pred_fallthru
        _
      %p349 = scmp.le.s32.totalorder 1, %s28
      %p350 = scmp.lt.s32.totalorder %s28, 17
      %p351 = pnand %p349, %p350
      %p352 = pneg %p351
      // Predicated region
      $region33: #{tpu_custom_call.1} parent=5 // pred_check
        _
      $region34: #{tpu_custom_call.1} parent=5 // pred_check_branch
        %354 = sbr.rel (%p351) target = $region36
      $region35: #{tpu_custom_call.1} parent=5 // pred_region
        %s355 = ssub.s32 %s28, 1
        %s356 = sand.u32 %s62, 1
        %s357 = scalar_lea.sflag [#allocation3], %s356
        %s358 = sand.u32 %s62, 1
        %s359 = smul.addr %s358, 256
        %s360 = scalar_lea.vmem [#allocation2], %s359
        // Predicated region
        $region37: #{tpu_custom_call.1} parent=35 // pred_check
          %p361 = pneg %p75
        $region38: #{tpu_custom_call.1} parent=35 // pred_check_branch
          %363 = sbr.rel (%p361) target = $region40
        $region39: #{tpu_custom_call.1} parent=35 // pred_region
          %364 = dma.done %s357, 4096
        $region40: #{tpu_custom_call.1} parent=35 // pred_fallthru
          _
        %s365 = sand.u32 %s33, 1
        %s366 = scalar_lea.sflag [#allocation6], %s365
        %s367 = sand.u32 %s88, 1
        %s368 = smul.addr %s367, 2048
        %s369 = scalar_lea.vmem [#allocation5], %s368
        // Predicated region
        $region41: #{tpu_custom_call.1} parent=35 // pred_check
          %p370 = pneg %p101
        $region42: #{tpu_custom_call.1} parent=35 // pred_check_branch
          %372 = sbr.rel (%p370) target = $region44
        $region43: #{tpu_custom_call.1} parent=35 // pred_region
          %373 = dma.done %s366, 32768
        $region44: #{tpu_custom_call.1} parent=35 // pred_fallthru
          _
        %s374 = sand.u32 %s33, 1
        %s375 = scalar_lea.sflag [#allocation6], %s374
        %s376 = sand.u32 %s114, 1
        %s377 = smul.addr %s376, 64
        %s378 = scalar_lea.vmem [#allocation7], %s377
        // Predicated region
        $region45: #{tpu_custom_call.1} parent=35 // pred_check
          %p379 = pneg %p127
        $region46: #{tpu_custom_call.1} parent=35 // pred_check_branch
          %381 = sbr.rel (%p379) target = $region48
        $region47: #{tpu_custom_call.1} parent=35 // pred_region
          %382 = dma.done %s375, 1024
        $region48: #{tpu_custom_call.1} parent=35 // pred_fallthru
          _
        %s383 = sand.u32 %s140, 1
        %s384 = scalar_lea.sflag [#allocation9], %s383
        %s385 = sand.u32 %s140, 1
        %s386 = smul.addr %s385, 64
        %s387 = scalar_lea.vmem [#allocation8], %s386
        // Predicated region
        $region49: #{tpu_custom_call.1} parent=35 // pred_check
          %p388 = pneg %p153
        $region50: #{tpu_custom_call.1} parent=35 // pred_check_branch
          %390 = sbr.rel (%p388) target = $region52
        $region51: #{tpu_custom_call.1} parent=35 // pred_region
          %391 = dma.done %s384, 1024
        $region52: #{tpu_custom_call.1} parent=35 // pred_fallthru
          _
        %s392 = sand.u32 %s62, 1
        %s393 = scalar_lea.sflag [#allocation3], %s392
        %s394 = sand.u32 %s62, 1
        %s395 = smul.addr %s394, 256
        %s396 = scalar_lea.vmem [#allocation2], %s395
        %p397 = pneg %p75
        %p398 = pneg %p72
        %s399 = sand.u32 %s33, 1
        %s400 = scalar_lea.sflag [#allocation6], %s399
        %s401 = sand.u32 %s88, 1
        %s402 = smul.addr %s401, 2048
        %s403 = scalar_lea.vmem [#allocation5], %s402
        %p404 = pneg %p101
        %p405 = pneg %p98
        %s406 = sand.u32 %s33, 1
        %s407 = scalar_lea.sflag [#allocation6], %s406
        %s408 = sand.u32 %s114, 1
        %s409 = smul.addr %s408, 64
        %s410 = scalar_lea.vmem [#allocation7], %s409
        %p411 = pneg %p127
        %p412 = pneg %p124
        %s413 = sand.u32 %s140, 1
        %s414 = scalar_lea.sflag [#allocation9], %s413
        %s415 = sand.u32 %s140, 1
        %s416 = smul.addr %s415, 64
        %s417 = scalar_lea.vmem [#allocation8], %s416
        %p418 = pneg %p153
        %p419 = pneg %p150
        %p420 = pneg %p183
        %p421 = pneg %p180
        %s422 = sand.u32 %s170, 1
        %s423 = scalar_lea.sflag [#allocation4], %s422
        %s424 = sand.u32 %s170, 1
        %s425 = smul.addr %s424, 128
        %s426 = scalar_lea.vmem [#allocation10], %s425
        %p427 = pneg %p213
        %p428 = pneg %p210
        %s429 = sand.u32 %s33, 1
        %s430 = scalar_lea.sflag [#allocation12], %s429
        %s431 = sand.u32 %s200, 1
        %s432 = smul.addr %s431, 64
        %s433 = scalar_lea.vmem [#allocation11], %s432
        %p434 = pneg %p243
        %p435 = pneg %p240
        %s436 = sand.u32 %s33, 1
        %s437 = scalar_lea.sflag [#allocation12], %s436
        %s438 = sand.u32 %s230, 1
        %s439 = smul.addr %s438, 64
        %s440 = scalar_lea.vmem [#allocation13], %s439
        %s441 = smul.u32 8, %s40
        %s442 = smul.u32 8, %s40
        %s443 = smul.u32 8, %s40
        %s444 = smul.u32 2, %s39
        %s445 = smul.u32 8, %s40
        %s446 = smul.u32 8, %s40
        %s447 = smul.u32 8, %s40
        %v448 = vld [vmem:[%s360] sm:$0xff]
        %v449 = vld [vmem:[%s360 + $0x8] sm:$0xff]
        %v450 = vld [vmem:[%s360 + $0x10] sm:$0xff]
        %v451 = vld [vmem:[%s360 + $0x18] sm:$0xff]
        %v452 = vld [vmem:[%s360 + $0x20] sm:$0xff]
        %v453 = vld [vmem:[%s360 + $0x28] sm:$0xff]
        %v454 = vld [vmem:[%s360 + $0x30] sm:$0xff]
        %v455 = vld [vmem:[%s360 + $0x38] sm:$0xff]
        %v456 = vld [vmem:[%s360 + $0x40] sm:$0xff]
        %v457 = vld [vmem:[%s360 + $0x48] sm:$0xff]
        %v458 = vld [vmem:[%s360 + $0x50] sm:$0xff]
        %v459 = vld [vmem:[%s360 + $0x58] sm:$0xff]
        %v460 = vld [vmem:[%s360 + $0x60] sm:$0xff]
        %v461 = vld [vmem:[%s360 + $0x68] sm:$0xff]
        %v462 = vld [vmem:[%s360 + $0x70] sm:$0xff]
        %v463 = vld [vmem:[%s360 + $0x78] sm:$0xff]
        %v464 = vld [vmem:[%s360 + $0x80] sm:$0xff]
        %v465 = vld [vmem:[%s360 + $0x88] sm:$0xff]
        %v466 = vld [vmem:[%s360 + $0x90] sm:$0xff]
        %v467 = vld [vmem:[%s360 + $0x98] sm:$0xff]
        %v468 = vld [vmem:[%s360 + $0xa0] sm:$0xff]
        %v469 = vld [vmem:[%s360 + $0xa8] sm:$0xff]
        %v470 = vld [vmem:[%s360 + $0xb0] sm:$0xff]
        %v471 = vld [vmem:[%s360 + $0xb8] sm:$0xff]
        %v472 = vld [vmem:[%s360 + $0xc0] sm:$0xff]
        %v473 = vld [vmem:[%s360 + $0xc8] sm:$0xff]
        %v474 = vld [vmem:[%s360 + $0xd0] sm:$0xff]
        %v475 = vld [vmem:[%s360 + $0xd8] sm:$0xff]
        %v476 = vld [vmem:[%s360 + $0xe0] sm:$0xff]
        %v477 = vld [vmem:[%s360 + $0xe8] sm:$0xff]
        %v478 = vld [vmem:[%s360 + $0xf0] sm:$0xff]
        %v479 = vld [vmem:[%s360 + $0xf8] sm:$0xff]
        %v480 = vld [vmem:[%s369] sm:$0xff]
        %v481 = vld [vmem:[%s369 + $0x8] sm:$0xff]
        %v482 = vld [vmem:[%s369 + $0x10] sm:$0xff]
        %v483 = vld [vmem:[%s369 + $0x18] sm:$0xff]
        %v484 = vld [vmem:[%s369 + $0x20] sm:$0xff]
        %v485 = vld [vmem:[%s369 + $0x28] sm:$0xff]
        %v486 = vld [vmem:[%s369 + $0x30] sm:$0xff]
        %v487 = vld [vmem:[%s369 + $0x38] sm:$0xff]
        %v488 = vld [vmem:[%s369 + $0x40] sm:$0xff]
        %v489 = vld [vmem:[%s369 + $0x48] sm:$0xff]
        %v490 = vld [vmem:[%s369 + $0x50] sm:$0xff]
        %v491 = vld [vmem:[%s369 + $0x58] sm:$0xff]
        %v492 = vld [vmem:[%s369 + $0x60] sm:$0xff]
        %v493 = vld [vmem:[%s369 + $0x68] sm:$0xff]
        %v494 = vld [vmem:[%s369 + $0x70] sm:$0xff]
        %v495 = vld [vmem:[%s369 + $0x78] sm:$0xff]
        %v496 = vld [vmem:[%s369 + $0x80] sm:$0xff]
        %v497 = vld [vmem:[%s369 + $0x88] sm:$0xff]
        %v498 = vld [vmem:[%s369 + $0x90] sm:$0xff]
        %v499 = vld [vmem:[%s369 + $0x98] sm:$0xff]
        %v500 = vld [vmem:[%s369 + $0xa0] sm:$0xff]
        %v501 = vld [vmem:[%s369 + $0xa8] sm:$0xff]
        %v502 = vld [vmem:[%s369 + $0xb0] sm:$0xff]
        %v503 = vld [vmem:[%s369 + $0xb8] sm:$0xff]
        %v504 = vld [vmem:[%s369 + $0xc0] sm:$0xff]
        %v505 = vld [vmem:[%s369 + $0xc8] sm:$0xff]
        %v506 = vld [vmem:[%s369 + $0xd0] sm:$0xff]
        %v507 = vld [vmem:[%s369 + $0xd8] sm:$0xff]
        %v508 = vld [vmem:[%s369 + $0xe0] sm:$0xff]
        %v509 = vld [vmem:[%s369 + $0xe8] sm:$0xff]
        %v510 = vld [vmem:[%s369 + $0xf0] sm:$0xff]
        %v511 = vld [vmem:[%s369 + $0xf8] sm:$0xff]
        %v512 = vld [vmem:[%s369 + $0x100] sm:$0xff]
        %v513 = vld [vmem:[%s369 + $0x108] sm:$0xff]
        %v514 = vld [vmem:[%s369 + $0x110] sm:$0xff]
        %v515 = vld [vmem:[%s369 + $0x118] sm:$0xff]
        %v516 = vld [vmem:[%s369 + $0x120] sm:$0xff]
        %v517 = vld [vmem:[%s369 + $0x128] sm:$0xff]
        %v518 = vld [vmem:[%s369 + $0x130] sm:$0xff]
        %v519 = vld [vmem:[%s369 + $0x138] sm:$0xff]
        %v520 = vld [vmem:[%s369 + $0x140] sm:$0xff]
        %v521 = vld [vmem:[%s369 + $0x148] sm:$0xff]
        %v522 = vld [vmem:[%s369 + $0x150] sm:$0xff]
        %v523 = vld [vmem:[%s369 + $0x158] sm:$0xff]
        %v524 = vld [vmem:[%s369 + $0x160] sm:$0xff]
        %v525 = vld [vmem:[%s369 + $0x168] sm:$0xff]
        %v526 = vld [vmem:[%s369 + $0x170] sm:$0xff]
        %v527 = vld [vmem:[%s369 + $0x178] sm:$0xff]
        %v528 = vld [vmem:[%s369 + $0x180] sm:$0xff]
        %v529 = vld [vmem:[%s369 + $0x188] sm:$0xff]
        %v530 = vld [vmem:[%s369 + $0x190] sm:$0xff]
        %v531 = vld [vmem:[%s369 + $0x198] sm:$0xff]
        %v532 = vld [vmem:[%s369 + $0x1a0] sm:$0xff]
        %v533 = vld [vmem:[%s369 + $0x1a8] sm:$0xff]
        %v534 = vld [vmem:[%s369 + $0x1b0] sm:$0xff]
        %v535 = vld [vmem:[%s369 + $0x1b8] sm:$0xff]
        %v536 = vld [vmem:[%s369 + $0x1c0] sm:$0xff]
        %v537 = vld [vmem:[%s369 + $0x1c8] sm:$0xff]
        %v538 = vld [vmem:[%s369 + $0x1d0] sm:$0xff]
        %v539 = vld [vmem:[%s369 + $0x1d8] sm:$0xff]
        %v540 = vld [vmem:[%s369 + $0x1e0] sm:$0xff]
        %v541 = vld [vmem:[%s369 + $0x1e8] sm:$0xff]
        %v542 = vld [vmem:[%s369 + $0x1f0] sm:$0xff]
        %v543 = vld [vmem:[%s369 + $0x1f8] sm:$0xff]
        %v544 = vld [vmem:[%s369 + $0x200] sm:$0xff]
        %v545 = vld [vmem:[%s369 + $0x208] sm:$0xff]
        %v546 = vld [vmem:[%s369 + $0x210] sm:$0xff]
        %v547 = vld [vmem:[%s369 + $0x218] sm:$0xff]
        %v548 = vld [vmem:[%s369 + $0x220] sm:$0xff]
        %v549 = vld [vmem:[%s369 + $0x228] sm:$0xff]
        %v550 = vld [vmem:[%s369 + $0x230] sm:$0xff]
        %v551 = vld [vmem:[%s369 + $0x238] sm:$0xff]
        %v552 = vld [vmem:[%s369 + $0x240] sm:$0xff]
        %v553 = vld [vmem:[%s369 + $0x248] sm:$0xff]
        %v554 = vld [vmem:[%s369 + $0x250] sm:$0xff]
        %v555 = vld [vmem:[%s369 + $0x258] sm:$0xff]
        %v556 = vld [vmem:[%s369 + $0x260] sm:$0xff]
        %v557 = vld [vmem:[%s369 + $0x268] sm:$0xff]
        %v558 = vld [vmem:[%s369 + $0x270] sm:$0xff]
        %v559 = vld [vmem:[%s369 + $0x278] sm:$0xff]
        %v560 = vld [vmem:[%s369 + $0x280] sm:$0xff]
        %v561 = vld [vmem:[%s369 + $0x288] sm:$0xff]
        %v562 = vld [vmem:[%s369 + $0x290] sm:$0xff]
        %v563 = vld [vmem:[%s369 + $0x298] sm:$0xff]
        %v564 = vld [vmem:[%s369 + $0x2a0] sm:$0xff]
        %v565 = vld [vmem:[%s369 + $0x2a8] sm:$0xff]
        %v566 = vld [vmem:[%s369 + $0x2b0] sm:$0xff]
        %v567 = vld [vmem:[%s369 + $0x2b8] sm:$0xff]
        %v568 = vld [vmem:[%s369 + $0x2c0] sm:$0xff]
        %v569 = vld [vmem:[%s369 + $0x2c8] sm:$0xff]
        %v570 = vld [vmem:[%s369 + $0x2d0] sm:$0xff]
        %v571 = vld [vmem:[%s369 + $0x2d8] sm:$0xff]
        %v572 = vld [vmem:[%s369 + $0x2e0] sm:$0xff]
        %v573 = vld [vmem:[%s369 + $0x2e8] sm:$0xff]
        %v574 = vld [vmem:[%s369 + $0x2f0] sm:$0xff]
        %v575 = vld [vmem:[%s369 + $0x2f8] sm:$0xff]
        %v576 = vld [vmem:[%s369 + $0x300] sm:$0xff]
        %v577 = vld [vmem:[%s369 + $0x308] sm:$0xff]
        %v578 = vld [vmem:[%s369 + $0x310] sm:$0xff]
        %v579 = vld [vmem:[%s369 + $0x318] sm:$0xff]
        %v580 = vld [vmem:[%s369 + $0x320] sm:$0xff]
        %v581 = vld [vmem:[%s369 + $0x328] sm:$0xff]
        %v582 = vld [vmem:[%s369 + $0x330] sm:$0xff]
        %v583 = vld [vmem:[%s369 + $0x338] sm:$0xff]
        %v584 = vld [vmem:[%s369 + $0x340] sm:$0xff]
        %v585 = vld [vmem:[%s369 + $0x348] sm:$0xff]
        %v586 = vld [vmem:[%s369 + $0x350] sm:$0xff]
        %v587 = vld [vmem:[%s369 + $0x358] sm:$0xff]
        %v588 = vld [vmem:[%s369 + $0x360] sm:$0xff]
        %v589 = vld [vmem:[%s369 + $0x368] sm:$0xff]
        %v590 = vld [vmem:[%s369 + $0x370] sm:$0xff]
        %v591 = vld [vmem:[%s369 + $0x378] sm:$0xff]
        %v592 = vld [vmem:[%s369 + $0x380] sm:$0xff]
        %v593 = vld [vmem:[%s369 + $0x388] sm:$0xff]
        %v594 = vld [vmem:[%s369 + $0x390] sm:$0xff]
        %v595 = vld [vmem:[%s369 + $0x398] sm:$0xff]
        %v596 = vld [vmem:[%s369 + $0x3a0] sm:$0xff]
        %v597 = vld [vmem:[%s369 + $0x3a8] sm:$0xff]
        %v598 = vld [vmem:[%s369 + $0x3b0] sm:$0xff]
        %v599 = vld [vmem:[%s369 + $0x3b8] sm:$0xff]
        %v600 = vld [vmem:[%s369 + $0x3c0] sm:$0xff]
        %v601 = vld [vmem:[%s369 + $0x3c8] sm:$0xff]
        %v602 = vld [vmem:[%s369 + $0x3d0] sm:$0xff]
        %v603 = vld [vmem:[%s369 + $0x3d8] sm:$0xff]
        %v604 = vld [vmem:[%s369 + $0x3e0] sm:$0xff]
        %v605 = vld [vmem:[%s369 + $0x3e8] sm:$0xff]
        %v606 = vld [vmem:[%s369 + $0x3f0] sm:$0xff]
        %v607 = vld [vmem:[%s369 + $0x3f8] sm:$0xff]
        %v608 = vld [vmem:[%s369 + $0x400] sm:$0xff]
        %v609 = vld [vmem:[%s369 + $0x408] sm:$0xff]
        %v610 = vld [vmem:[%s369 + $0x410] sm:$0xff]
        %v611 = vld [vmem:[%s369 + $0x418] sm:$0xff]
        %v612 = vld [vmem:[%s369 + $0x420] sm:$0xff]
        %v613 = vld [vmem:[%s369 + $0x428] sm:$0xff]
        %v614 = vld [vmem:[%s369 + $0x430] sm:$0xff]
        %v615 = vld [vmem:[%s369 + $0x438] sm:$0xff]
        %v616 = vld [vmem:[%s369 + $0x440] sm:$0xff]
        %v617 = vld [vmem:[%s369 + $0x448] sm:$0xff]
        %v618 = vld [vmem:[%s369 + $0x450] sm:$0xff]
        %v619 = vld [vmem:[%s369 + $0x458] sm:$0xff]
        %v620 = vld [vmem:[%s369 + $0x460] sm:$0xff]
        %v621 = vld [vmem:[%s369 + $0x468] sm:$0xff]
        %v622 = vld [vmem:[%s369 + $0x470] sm:$0xff]
        %v623 = vld [vmem:[%s369 + $0x478] sm:$0xff]
        %v624 = vld [vmem:[%s369 + $0x480] sm:$0xff]
        %v625 = vld [vmem:[%s369 + $0x488] sm:$0xff]
        %v626 = vld [vmem:[%s369 + $0x490] sm:$0xff]
        %v627 = vld [vmem:[%s369 + $0x498] sm:$0xff]
        %v628 = vld [vmem:[%s369 + $0x4a0] sm:$0xff]
        %v629 = vld [vmem:[%s369 + $0x4a8] sm:$0xff]
        %v630 = vld [vmem:[%s369 + $0x4b0] sm:$0xff]
        %v631 = vld [vmem:[%s369 + $0x4b8] sm:$0xff]
        %v632 = vld [vmem:[%s369 + $0x4c0] sm:$0xff]
        %v633 = vld [vmem:[%s369 + $0x4c8] sm:$0xff]
        %v634 = vld [vmem:[%s369 + $0x4d0] sm:$0xff]
        %v635 = vld [vmem:[%s369 + $0x4d8] sm:$0xff]
        %v636 = vld [vmem:[%s369 + $0x4e0] sm:$0xff]
        %v637 = vld [vmem:[%s369 + $0x4e8] sm:$0xff]
        %v638 = vld [vmem:[%s369 + $0x4f0] sm:$0xff]
        %v639 = vld [vmem:[%s369 + $0x4f8] sm:$0xff]
        %v640 = vld [vmem:[%s369 + $0x500] sm:$0xff]
        %v641 = vld [vmem:[%s369 + $0x508] sm:$0xff]
        %v642 = vld [vmem:[%s369 + $0x510] sm:$0xff]
        %v643 = vld [vmem:[%s369 + $0x518] sm:$0xff]
        %v644 = vld [vmem:[%s369 + $0x520] sm:$0xff]
        %v645 = vld [vmem:[%s369 + $0x528] sm:$0xff]
        %v646 = vld [vmem:[%s369 + $0x530] sm:$0xff]
        %v647 = vld [vmem:[%s369 + $0x538] sm:$0xff]
        %v648 = vld [vmem:[%s369 + $0x540] sm:$0xff]
        %v649 = vld [vmem:[%s369 + $0x548] sm:$0xff]
        %v650 = vld [vmem:[%s369 + $0x550] sm:$0xff]
        %v651 = vld [vmem:[%s369 + $0x558] sm:$0xff]
        %v652 = vld [vmem:[%s369 + $0x560] sm:$0xff]
        %v653 = vld [vmem:[%s369 + $0x568] sm:$0xff]
        %v654 = vld [vmem:[%s369 + $0x570] sm:$0xff]
        %v655 = vld [vmem:[%s369 + $0x578] sm:$0xff]
        %v656 = vld [vmem:[%s369 + $0x580] sm:$0xff]
        %v657 = vld [vmem:[%s369 + $0x588] sm:$0xff]
        %v658 = vld [vmem:[%s369 + $0x590] sm:$0xff]
        %v659 = vld [vmem:[%s369 + $0x598] sm:$0xff]
        %v660 = vld [vmem:[%s369 + $0x5a0] sm:$0xff]
        %v661 = vld [vmem:[%s369 + $0x5a8] sm:$0xff]
        %v662 = vld [vmem:[%s369 + $0x5b0] sm:$0xff]
        %v663 = vld [vmem:[%s369 + $0x5b8] sm:$0xff]
        %v664 = vld [vmem:[%s369 + $0x5c0] sm:$0xff]
        %v665 = vld [vmem:[%s369 + $0x5c8] sm:$0xff]
        %v666 = vld [vmem:[%s369 + $0x5d0] sm:$0xff]
        %v667 = vld [vmem:[%s369 + $0x5d8] sm:$0xff]
        %v668 = vld [vmem:[%s369 + $0x5e0] sm:$0xff]
        %v669 = vld [vmem:[%s369 + $0x5e8] sm:$0xff]
        %v670 = vld [vmem:[%s369 + $0x5f0] sm:$0xff]
        %v671 = vld [vmem:[%s369 + $0x5f8] sm:$0xff]
        %v672 = vld [vmem:[%s369 + $0x600] sm:$0xff]
        %v673 = vld [vmem:[%s369 + $0x608] sm:$0xff]
        %v674 = vld [vmem:[%s369 + $0x610] sm:$0xff]
        %v675 = vld [vmem:[%s369 + $0x618] sm:$0xff]
        %v676 = vld [vmem:[%s369 + $0x620] sm:$0xff]
        %v677 = vld [vmem:[%s369 + $0x628] sm:$0xff]
        %v678 = vld [vmem:[%s369 + $0x630] sm:$0xff]
        %v679 = vld [vmem:[%s369 + $0x638] sm:$0xff]
        %v680 = vld [vmem:[%s369 + $0x640] sm:$0xff]
        %v681 = vld [vmem:[%s369 + $0x648] sm:$0xff]
        %v682 = vld [vmem:[%s369 + $0x650] sm:$0xff]
        %v683 = vld [vmem:[%s369 + $0x658] sm:$0xff]
        %v684 = vld [vmem:[%s369 + $0x660] sm:$0xff]
        %v685 = vld [vmem:[%s369 + $0x668] sm:$0xff]
        %v686 = vld [vmem:[%s369 + $0x670] sm:$0xff]
        %v687 = vld [vmem:[%s369 + $0x678] sm:$0xff]
        %v688 = vld [vmem:[%s369 + $0x680] sm:$0xff]
        %v689 = vld [vmem:[%s369 + $0x688] sm:$0xff]
        %v690 = vld [vmem:[%s369 + $0x690] sm:$0xff]
        %v691 = vld [vmem:[%s369 + $0x698] sm:$0xff]
        %v692 = vld [vmem:[%s369 + $0x6a0] sm:$0xff]
        %v693 = vld [vmem:[%s369 + $0x6a8] sm:$0xff]
        %v694 = vld [vmem:[%s369 + $0x6b0] sm:$0xff]
        %v695 = vld [vmem:[%s369 + $0x6b8] sm:$0xff]
        %v696 = vld [vmem:[%s369 + $0x6c0] sm:$0xff]
        %v697 = vld [vmem:[%s369 + $0x6c8] sm:$0xff]
        %v698 = vld [vmem:[%s369 + $0x6d0] sm:$0xff]
        %v699 = vld [vmem:[%s369 + $0x6d8] sm:$0xff]
        %v700 = vld [vmem:[%s369 + $0x6e0] sm:$0xff]
        %v701 = vld [vmem:[%s369 + $0x6e8] sm:$0xff]
        %v702 = vld [vmem:[%s369 + $0x6f0] sm:$0xff]
        %v703 = vld [vmem:[%s369 + $0x6f8] sm:$0xff]
        %v704 = vld [vmem:[%s369 + $0x700] sm:$0xff]
        %v705 = vld [vmem:[%s369 + $0x708] sm:$0xff]
        %v706 = vld [vmem:[%s369 + $0x710] sm:$0xff]
        %v707 = vld [vmem:[%s369 + $0x718] sm:$0xff]
        %v708 = vld [vmem:[%s369 + $0x720] sm:$0xff]
        %v709 = vld [vmem:[%s369 + $0x728] sm:$0xff]
        %v710 = vld [vmem:[%s369 + $0x730] sm:$0xff]
        %v711 = vld [vmem:[%s369 + $0x738] sm:$0xff]
        %v712 = vld [vmem:[%s369 + $0x740] sm:$0xff]
        %v713 = vld [vmem:[%s369 + $0x748] sm:$0xff]
        %v714 = vld [vmem:[%s369 + $0x750] sm:$0xff]
        %v715 = vld [vmem:[%s369 + $0x758] sm:$0xff]
        %v716 = vld [vmem:[%s369 + $0x760] sm:$0xff]
        %v717 = vld [vmem:[%s369 + $0x768] sm:$0xff]
        %v718 = vld [vmem:[%s369 + $0x770] sm:$0xff]
        %v719 = vld [vmem:[%s369 + $0x778] sm:$0xff]
        %v720 = vld [vmem:[%s369 + $0x780] sm:$0xff]
        %v721 = vld [vmem:[%s369 + $0x788] sm:$0xff]
        %v722 = vld [vmem:[%s369 + $0x790] sm:$0xff]
        %v723 = vld [vmem:[%s369 + $0x798] sm:$0xff]
        %v724 = vld [vmem:[%s369 + $0x7a0] sm:$0xff]
        %v725 = vld [vmem:[%s369 + $0x7a8] sm:$0xff]
        %v726 = vld [vmem:[%s369 + $0x7b0] sm:$0xff]
        %v727 = vld [vmem:[%s369 + $0x7b8] sm:$0xff]
        %v728 = vld [vmem:[%s369 + $0x7c0] sm:$0xff]
        %v729 = vld [vmem:[%s369 + $0x7c8] sm:$0xff]
        %v730 = vld [vmem:[%s369 + $0x7d0] sm:$0xff]
        %v731 = vld [vmem:[%s369 + $0x7d8] sm:$0xff]
        %v732 = vld [vmem:[%s369 + $0x7e0] sm:$0xff]
        %v733 = vld [vmem:[%s369 + $0x7e8] sm:$0xff]
        %v734 = vld [vmem:[%s369 + $0x7f0] sm:$0xff]
        %v735 = vld [vmem:[%s369 + $0x7f8] sm:$0xff]
        %736 = vmatprep.subr.mxu0 %v481
        %737 = vmatpush1.msra.mxu0 %v480
        %738 = vmatprep.subr.mxu0 %v485
        %739 = vmatpush1.msra.mxu0 %v484
        %740 = vmatprep.subr.mxu0 %v489
        %741 = vmatpush1.msra.mxu0 %v488
        %742 = vmatprep.subr.mxu0 %v493
        %743 = vmatpush1.msra.mxu0 %v492
        %744 = vmatprep.subr.mxu0 %v497
        %745 = vmatpush1.msra.mxu0 %v496
        %746 = vmatprep.subr.mxu0 %v501
        %747 = vmatpush1.msra.mxu0 %v500
        %748 = vmatprep.subr.mxu0 %v505
        %749 = vmatpush1.msra.mxu0 %v504
        %750 = vmatprep.subr.mxu0 %v509
        %751 = vmatpush1.msra.mxu0 %v508
        %752 = vmatprep.subr.mxu0 %v513
        %753 = vmatpush1.msra.mxu0 %v512
        %754 = vmatprep.subr.mxu0 %v517
        %755 = vmatpush1.msra.mxu0 %v516
        %756 = vmatprep.subr.mxu0 %v521
        %757 = vmatpush1.msra.mxu0 %v520
        %758 = vmatprep.subr.mxu0 %v525
        %759 = vmatpush1.msra.mxu0 %v524
        %760 = vmatprep.subr.mxu0 %v529
        %761 = vmatpush1.msra.mxu0 %v528
        %762 = vmatprep.subr.mxu0 %v533
        %763 = vmatpush1.msra.mxu0 %v532
        %764 = vmatprep.subr.mxu0 %v537
        %765 = vmatpush1.msra.mxu0 %v536
        %766 = vmatprep.subr.mxu0 %v541
        %767 = vmatpush1.msra.mxu0 %v540
        %768 = vmatprep.subr.mxu0 %v545
        %769 = vmatpush1.msra.mxu0 %v544
        %770 = vmatprep.subr.mxu0 %v549
        %771 = vmatpush1.msra.mxu0 %v548
        %772 = vmatprep.subr.mxu0 %v553
        %773 = vmatpush1.msra.mxu0 %v552
        %774 = vmatprep.subr.mxu0 %v557
        %775 = vmatpush1.msra.mxu0 %v556
        %776 = vmatprep.subr.mxu0 %v561
        %777 = vmatpush1.msra.mxu0 %v560
        %778 = vmatprep.subr.mxu0 %v565
        %779 = vmatpush1.msra.mxu0 %v564
        %780 = vmatprep.subr.mxu0 %v569
        %781 = vmatpush1.msra.mxu0 %v568
        %782 = vmatprep.subr.mxu0 %v573
        %783 = vmatpush1.msra.mxu0 %v572
        %784 = vmatprep.subr.mxu0 %v577
        %785 = vmatpush1.msra.mxu0 %v576
        %786 = vmatprep.subr.mxu0 %v581
        %787 = vmatpush1.msra.mxu0 %v580
        %788 = vmatprep.subr.mxu0 %v585
        %789 = vmatpush1.msra.mxu0 %v584
        %790 = vmatprep.subr.mxu0 %v589
        %791 = vmatpush1.msra.mxu0 %v588
        %792 = vmatprep.subr.mxu0 %v593
        %793 = vmatpush1.msra.mxu0 %v592
        %794 = vmatprep.subr.mxu0 %v597
        %795 = vmatpush1.msra.mxu0 %v596
        %796 = vmatprep.subr.mxu0 %v601
        %797 = vmatpush1.msra.mxu0 %v600
        %798 = vmatprep.subr.mxu0 %v605
        %799 = vmatpush1.msra.mxu0 %v604
        %800 = vmatprep.mubr.f32.mxu0 %v449
        %801 = vmatmul.mubr.f32.gmra.mrb[0].mxu0 %v448
        %v802 = vpop.f32.mrb[0].mxu0
        %v803 = vadd.f32 0.0, %v802
        %v804 = vpop.f32.mrb[0].mxu0
        %v805 = vadd.f32 0.0, %v804
        %806 = vmatprep.mubr.f32.mxu0 %v453
        %807 = vmatmul.mubr.f32.gmra.mrb[0].mxu0 %v452
        %v808 = vpop.f32.mrb[0].mxu0
        %v809 = vadd.f32 0.0, %v808
        %v810 = vpop.f32.mrb[0].mxu0
        %v811 = vadd.f32 0.0, %v810
        %812 = vmatprep.mubr.f32.mxu0 %v457
        %813 = vmatmul.mubr.f32.gmra.mrb[0].mxu0 %v456
        %v814 = vpop.f32.mrb[0].mxu0
        %v815 = vadd.f32 0.0, %v814
        %v816 = vpop.f32.mrb[0].mxu0
        %v817 = vadd.f32 0.0, %v816
        %818 = vmatprep.mubr.f32.mxu0 %v461
        %819 = vmatmul.mubr.f32.gmra.mrb[0].mxu0 %v460
        %v820 = vpop.f32.mrb[0].mxu0
        %v821 = vadd.f32 0.0, %v820
        %v822 = vpop.f32.mrb[0].mxu0
        %v823 = vadd.f32 0.0, %v822
        %824 = vmatprep.mubr.f32.mxu0 %v465
        %825 = vmatmul.mubr.f32.gmra.mrb[0].mxu0 %v464
        %v826 = vpop.f32.mrb[0].mxu0
        %v827 = vadd.f32 0.0, %v826
        %v828 = vpop.f32.mrb[0].mxu0
        %v829 = vadd.f32 0.0, %v828
        %830 = vmatprep.mubr.f32.mxu0 %v469
        %831 = vmatmul.mubr.f32.gmra.mrb[0].mxu0 %v468
        %v832 = vpop.f32.mrb[0].mxu0
        %v833 = vadd.f32 0.0, %v832
        %v834 = vpop.f32.mrb[0].mxu0
        %v835 = vadd.f32 0.0, %v834
        %836 = vmatprep.mubr.f32.mxu0 %v473
        %837 = vmatmul.mubr.f32.gmra.mrb[0].mxu0 %v472
        %v838 = vpop.f32.mrb[0].mxu0
        %v839 = vadd.f32 0.0, %v838
        %v840 = vpop.f32.mrb[0].mxu0
        %v841 = vadd.f32 0.0, %v840
        %842 = vmatprep.mubr.f32.mxu0 %v477
        %843 = vmatmul.mubr.f32.gmra.mrb[0].mxu0 %v476
        %v844 = vpop.f32.mrb[0].mxu0
        %v845 = vadd.f32 0.0, %v844
        %v846 = vpop.f32.mrb[0].mxu0
        %v847 = vadd.f32 0.0, %v846
        %848 = vdwg.mxu0
        %849 = vmatprep.subr.mxu0 %v609
        %850 = vmatpush1.msra.mxu0 %v608
        %851 = vmatprep.subr.mxu0 %v613
        %852 = vmatpush1.msra.mxu0 %v612
        %853 = vmatprep.subr.mxu0 %v617
        %854 = vmatpush1.msra.mxu0 %v616
        %855 = vmatprep.subr.mxu0 %v621
        %856 = vmatpush1.msra.mxu0 %v620
        %857 = vmatprep.subr.mxu0 %v625
        %858 = vmatpush1.msra.mxu0 %v624
        %859 = vmatprep.subr.mxu0 %v629
        %860 = vmatpush1.msra.mxu0 %v628
        %861 = vmatprep.subr.mxu0 %v633
        %862 = vmatpush1.msra.mxu0 %v632
        %863 = vmatprep.subr.mxu0 %v637
        %864 = vmatpush1.msra.mxu0 %v636
        %865 = vmatprep.subr.mxu0 %v641
        %866 = vmatpush1.msra.mxu0 %v640
        %867 = vmatprep.subr.mxu0 %v645
        %868 = vmatpush1.msra.mxu0 %v644
        %869 = vmatprep.subr.mxu0 %v649
        %870 = vmatpush1.msra.mxu0 %v648
        %871 = vmatprep.subr.mxu0 %v653
        %872 = vmatpush1.msra.mxu0 %v652
        %873 = vmatprep.subr.mxu0 %v657
        %874 = vmatpush1.msra.mxu0 %v656
        %875 = vmatprep.subr.mxu0 %v661
        %876 = vmatpush1.msra.mxu0 %v660
        %877 = vmatprep.subr.mxu0 %v665
        %878 = vmatpush1.msra.mxu0 %v664
        %879 = vmatprep.subr.mxu0 %v669
        %880 = vmatpush1.msra.mxu0 %v668
        %881 = vmatprep.subr.mxu0 %v673
        %882 = vmatpush1.msra.mxu0 %v672
        %883 = vmatprep.subr.mxu0 %v677
        %884 = vmatpush1.msra.mxu0 %v676
        %885 = vmatprep.subr.mxu0 %v681
        %886 = vmatpush1.msra.mxu0 %v680
        %887 = vmatprep.subr.mxu0 %v685
        %888 = vmatpush1.msra.mxu0 %v684
        %889 = vmatprep.subr.mxu0 %v689
        %890 = vmatpush1.msra.mxu0 %v688
        %891 = vmatprep.subr.mxu0 %v693
        %892 = vmatpush1.msra.mxu0 %v692
        %893 = vmatprep.subr.mxu0 %v697
        %894 = vmatpush1.msra.mxu0 %v696
        %895 = vmatprep.subr.mxu0 %v701
        %896 = vmatpush1.msra.mxu0 %v700
        %897 = vmatprep.subr.mxu0 %v705
        %898 = vmatpush1.msra.mxu0 %v704
        %899 = vmatprep.subr.mxu0 %v709
        %900 = vmatpush1.msra.mxu0 %v708
        %901 = vmatprep.subr.mxu0 %v713
        %902 = vmatpush1.msra.mxu0 %v712
        %903 = vmatprep.subr.mxu0 %v717
        %904 = vmatpush1.msra.mxu0 %v716
        %905 = vmatprep.subr.mxu0 %v721
        %906 = vmatpush1.msra.mxu0 %v720
        %907 = vmatprep.subr.mxu0 %v725
        %908 = vmatpush1.msra.mxu0 %v724
        %909 = vmatprep.subr.mxu0 %v729
        %910 = vmatpush1.msra.mxu0 %v728
        %911 = vmatprep.subr.mxu0 %v733
        %912 = vmatpush1.msra.mxu0 %v732
        %913 = vmatprep.mubr.f32.mxu0 %v451
        %914 = vmatmul.mubr.f32.gmra.mrb[0].mxu0 %v450
        %v915 = vpop.f32.mrb[0].mxu0
        %v916 = vadd.f32 %v803, %v915
        %v917 = vpop.f32.mrb[0].mxu0
        %v918 = vadd.f32 %v805, %v917
        %919 = vmatprep.mubr.f32.mxu0 %v455
        %920 = vmatmul.mubr.f32.gmra.mrb[0].mxu0 %v454
        %v921 = vpop.f32.mrb[0].mxu0
        %v922 = vadd.f32 %v809, %v921
        %v923 = vpop.f32.mrb[0].mxu0
        %v924 = vadd.f32 %v811, %v923
        %925 = vmatprep.mubr.f32.mxu0 %v459
        %926 = vmatmul.mubr.f32.gmra.mrb[0].mxu0 %v458
        %v927 = vpop.f32.mrb[0].mxu0
        %v928 = vadd.f32 %v815, %v927
        %v929 = vpop.f32.mrb[0].mxu0
        %v930 = vadd.f32 %v817, %v929
        %931 = vmatprep.mubr.f32.mxu0 %v463
        %932 = vmatmul.mubr.f32.gmra.mrb[0].mxu0 %v462
        %v933 = vpop.f32.mrb[0].mxu0
        %v934 = vadd.f32 %v821, %v933
        %v935 = vpop.f32.mrb[0].mxu0
        %v936 = vadd.f32 %v823, %v935
        %937 = vmatprep.mubr.f32.mxu0 %v467
        %938 = vmatmul.mubr.f32.gmra.mrb[0].mxu0 %v466
        %v939 = vpop.f32.mrb[0].mxu0
        %v940 = vadd.f32 %v827, %v939
        %v941 = vpop.f32.mrb[0].mxu0
        %v942 = vadd.f32 %v829, %v941
        %943 = vmatprep.mubr.f32.mxu0 %v471
        %944 = vmatmul.mubr.f32.gmra.mrb[0].mxu0 %v470
        %v945 = vpop.f32.mrb[0].mxu0
        %v946 = vadd.f32 %v833, %v945
        %v947 = vpop.f32.mrb[0].mxu0
        %v948 = vadd.f32 %v835, %v947
        %949 = vmatprep.mubr.f32.mxu0 %v475
        %950 = vmatmul.mubr.f32.gmra.mrb[0].mxu0 %v474
        %v951 = vpop.f32.mrb[0].mxu0
        %v952 = vadd.f32 %v839, %v951
        %v953 = vpop.f32.mrb[0].mxu0
        %v954 = vadd.f32 %v841, %v953
        %955 = vmatprep.mubr.f32.mxu0 %v479
        %956 = vmatmul.mubr.f32.gmra.mrb[0].mxu0 %v478
        %v957 = vpop.f32.mrb[0].mxu0
        %v958 = vadd.f32 %v845, %v957
        %v959 = vpop.f32.mrb[0].mxu0
        %v960 = vadd.f32 %v847, %v959
        %961 = vdwg.mxu0
        %962 = vmatprep.subr.mxu0 %v483
        %963 = vmatpush1.msra.mxu0 %v482
        %964 = vmatprep.subr.mxu0 %v487
        %965 = vmatpush1.msra.mxu0 %v486
        %966 = vmatprep.subr.mxu0 %v491
        %967 = vmatpush1.msra.mxu0 %v490
        %968 = vmatprep.subr.mxu0 %v495
        %969 = vmatpush1.msra.mxu0 %v494
        %970 = vmatprep.subr.mxu0 %v499
        %971 = vmatpush1.msra.mxu0 %v498
        %972 = vmatprep.subr.mxu0 %v503
        %973 = vmatpush1.msra.mxu0 %v502
        %974 = vmatprep.subr.mxu0 %v507
        %975 = vmatpush1.msra.mxu0 %v506
        %976 = vmatprep.subr.mxu0 %v511
        %977 = vmatpush1.msra.mxu0 %v510
        %978 = vmatprep.subr.mxu0 %v515
        %979 = vmatpush1.msra.mxu0 %v514
        %980 = vmatprep.subr.mxu0 %v519
        %981 = vmatpush1.msra.mxu0 %v518
        %982 = vmatprep.subr.mxu0 %v523
        %983 = vmatpush1.msra.mxu0 %v522
        %984 = vmatprep.subr.mxu0 %v527
        %985 = vmatpush1.msra.mxu0 %v526
        %986 = vmatprep.subr.mxu0 %v531
        %987 = vmatpush1.msra.mxu0 %v530
        %988 = vmatprep.subr.mxu0 %v535
        %989 = vmatpush1.msra.mxu0 %v534
        %990 = vmatprep.subr.mxu0 %v539
        %991 = vmatpush1.msra.mxu0 %v538
        %992 = vmatprep.subr.mxu0 %v543
        %993 = vmatpush1.msra.mxu0 %v542
        %994 = vmatprep.subr.mxu0 %v547
        %995 = vmatpush1.msra.mxu0 %v546
        %996 = vmatprep.subr.mxu0 %v551
        %997 = vmatpush1.msra.mxu0 %v550
        %998 = vmatprep.subr.mxu0 %v555
        %999 = vmatpush1.msra.mxu0 %v554
        %1000 = vmatprep.subr.mxu0 %v559
        %1001 = vmatpush1.msra.mxu0 %v558
        %1002 = vmatprep.subr.mxu0 %v563
        %1003 = vmatpush1.msra.mxu0 %v562
        %1004 = vmatprep.subr.mxu0 %v567
        %1005 = vmatpush1.msra.mxu0 %v566
        %1006 = vmatprep.subr.mxu0 %v571
        %1007 = vmatpush1.msra.mxu0 %v570
        %1008 = vmatprep.subr.mxu0 %v575
        %1009 = vmatpush1.msra.mxu0 %v574
        %1010 = vmatprep.subr.mxu0 %v579
        %1011 = vmatpush1.msra.mxu0 %v578
        %1012 = vmatprep.subr.mxu0 %v583
        %1013 = vmatpush1.msra.mxu0 %v582
        %1014 = vmatprep.subr.mxu0 %v587
        %1015 = vmatpush1.msra.mxu0 %v586
        %1016 = vmatprep.subr.mxu0 %v591
        %1017 = vmatpush1.msra.mxu0 %v590
        %1018 = vmatprep.subr.mxu0 %v595
        %1019 = vmatpush1.msra.mxu0 %v594
        %1020 = vmatprep.subr.mxu0 %v599
        %1021 = vmatpush1.msra.mxu0 %v598
        %1022 = vmatprep.subr.mxu0 %v603
        %1023 = vmatpush1.msra.mxu0 %v602
        %1024 = vmatprep.subr.mxu0 %v607
        %1025 = vmatpush1.msra.mxu0 %v606
        %1026 = vmatprep.mubr.f32.mxu0 %v449
        %1027 = vmatmul.mubr.f32.gmra.mrb[0].mxu0 %v448
        %v1028 = vpop.f32.mrb[0].mxu0
        %v1029 = vadd.f32 0.0, %v1028
        %v1030 = vpop.f32.mrb[0].mxu0
        %v1031 = vadd.f32 0.0, %v1030
        %1032 = vmatprep.mubr.f32.mxu0 %v453
        %1033 = vmatmul.mubr.f32.gmra.mrb[0].mxu0 %v452
        %v1034 = vpop.f32.mrb[0].mxu0
        %v1035 = vadd.f32 0.0, %v1034
        %v1036 = vpop.f32.mrb[0].mxu0
        %v1037 = vadd.f32 0.0, %v1036
        %1038 = vmatprep.mubr.f32.mxu0 %v457
        %1039 = vmatmul.mubr.f32.gmra.mrb[0].mxu0 %v456
        %v1040 = vpop.f32.mrb[0].mxu0
        %v1041 = vadd.f32 0.0, %v1040
        %v1042 = vpop.f32.mrb[0].mxu0
        %v1043 = vadd.f32 0.0, %v1042
        %1044 = vmatprep.mubr.f32.mxu0 %v461
        %1045 = vmatmul.mubr.f32.gmra.mrb[0].mxu0 %v460
        %v1046 = vpop.f32.mrb[0].mxu0
        %v1047 = vadd.f32 0.0, %v1046
        %v1048 = vpop.f32.mrb[0].mxu0
        %v1049 = vadd.f32 0.0, %v1048
        %1050 = vmatprep.mubr.f32.mxu0 %v465
        %1051 = vmatmul.mubr.f32.gmra.mrb[0].mxu0 %v464
        %v1052 = vpop.f32.mrb[0].mxu0
        %v1053 = vadd.f32 0.0, %v1052
        %v1054 = vpop.f32.mrb[0].mxu0
        %v1055 = vadd.f32 0.0, %v1054
        %1056 = vmatprep.mubr.f32.mxu0 %v469
        %1057 = vmatmul.mubr.f32.gmra.mrb[0].mxu0 %v468
        %v1058 = vpop.f32.mrb[0].mxu0
        %v1059 = vadd.f32 0.0, %v1058
        %v1060 = vpop.f32.mrb[0].mxu0
        %v1061 = vadd.f32 0.0, %v1060
        %1062 = vmatprep.mubr.f32.mxu0 %v473
        %1063 = vmatmul.mubr.f32.gmra.mrb[0].mxu0 %v472
        %v1064 = vpop.f32.mrb[0].mxu0
        %v1065 = vadd.f32 0.0, %v1064
        %v1066 = vpop.f32.mrb[0].mxu0
        %v1067 = vadd.f32 0.0, %v1066
        %1068 = vmatprep.mubr.f32.mxu0 %v477
        %1069 = vmatmul.mubr.f32.gmra.mrb[0].mxu0 %v476
        %v1070 = vpop.f32.mrb[0].mxu0
        %v1071 = vadd.f32 0.0, %v1070
        %v1072 = vpop.f32.mrb[0].mxu0
        %v1073 = vadd.f32 0.0, %v1072
        %1074 = vdwg.mxu0
        %1075 = vmatprep.subr.mxu0 %v611
        %1076 = vmatpush1.msra.mxu0 %v610
        %1077 = vmatprep.subr.mxu0 %v615
        %1078 = vmatpush1.msra.mxu0 %v614
        %1079 = vmatprep.subr.mxu0 %v619
        %1080 = vmatpush1.msra.mxu0 %v618
        %1081 = vmatprep.subr.mxu0 %v623
        %1082 = vmatpush1.msra.mxu0 %v622
        %1083 = vmatprep.subr.mxu0 %v627
        %1084 = vmatpush1.msra.mxu0 %v626
        %1085 = vmatprep.subr.mxu0 %v631
        %1086 = vmatpush1.msra.mxu0 %v630
        %1087 = vmatprep.subr.mxu0 %v635
        %1088 = vmatpush1.msra.mxu0 %v634
        %1089 = vmatprep.subr.mxu0 %v639
        %1090 = vmatpush1.msra.mxu0 %v638
        %1091 = vmatprep.subr.mxu0 %v643
        %1092 = vmatpush1.msra.mxu0 %v642
        %1093 = vmatprep.subr.mxu0 %v647
        %1094 = vmatpush1.msra.mxu0 %v646
        %1095 = vmatprep.subr.mxu0 %v651
        %1096 = vmatpush1.msra.mxu0 %v650
        %1097 = vmatprep.subr.mxu0 %v655
        %1098 = vmatpush1.msra.mxu0 %v654
        %1099 = vmatprep.subr.mxu0 %v659
        %1100 = vmatpush1.msra.mxu0 %v658
        %1101 = vmatprep.subr.mxu0 %v663
        %1102 = vmatpush1.msra.mxu0 %v662
        %1103 = vmatprep.subr.mxu0 %v667
        %1104 = vmatpush1.msra.mxu0 %v666
        %1105 = vmatprep.subr.mxu0 %v671
        %1106 = vmatpush1.msra.mxu0 %v670
        %1107 = vmatprep.subr.mxu0 %v675
        %1108 = vmatpush1.msra.mxu0 %v674
        %1109 = vmatprep.subr.mxu0 %v679
        %1110 = vmatpush1.msra.mxu0 %v678
        %1111 = vmatprep.subr.mxu0 %v683
        %1112 = vmatpush1.msra.mxu0 %v682
        %1113 = vmatprep.subr.mxu0 %v687
        %1114 = vmatpush1.msra.mxu0 %v686
        %1115 = vmatprep.subr.mxu0 %v691
        %1116 = vmatpush1.msra.mxu0 %v690
        %1117 = vmatprep.subr.mxu0 %v695
        %1118 = vmatpush1.msra.mxu0 %v694
        %1119 = vmatprep.subr.mxu0 %v699
        %1120 = vmatpush1.msra.mxu0 %v698
        %1121 = vmatprep.subr.mxu0 %v703
        %1122 = vmatpush1.msra.mxu0 %v702
        %1123 = vmatprep.subr.mxu0 %v707
        %1124 = vmatpush1.msra.mxu0 %v706
        %1125 = vmatprep.subr.mxu0 %v711
        %1126 = vmatpush1.msra.mxu0 %v710
        %1127 = vmatprep.subr.mxu0 %v715
        %1128 = vmatpush1.msra.mxu0 %v714
        %1129 = vmatprep.subr.mxu0 %v719
        %1130 = vmatpush1.msra.mxu0 %v718
        %1131 = vmatprep.subr.mxu0 %v723
        %1132 = vmatpush1.msra.mxu0 %v722
        %1133 = vmatprep.subr.mxu0 %v727
        %1134 = vmatpush1.msra.mxu0 %v726
        %1135 = vmatprep.subr.mxu0 %v731
        %1136 = vmatpush1.msra.mxu0 %v730
        %1137 = vmatprep.subr.mxu0 %v735
        %1138 = vmatpush1.msra.mxu0 %v734
        %1139 = vmatprep.mubr.f32.mxu0 %v451
        %1140 = vmatmul.mubr.f32.gmra.mrb[0].mxu0 %v450
        %v1141 = vpop.f32.mrb[0].mxu0
        %v1142 = vadd.f32 %v1029, %v1141
        %v1143 = vpop.f32.mrb[0].mxu0
        %v1144 = vadd.f32 %v1031, %v1143
        %1145 = vmatprep.mubr.f32.mxu0 %v455
        %1146 = vmatmul.mubr.f32.gmra.mrb[0].mxu0 %v454
        %v1147 = vpop.f32.mrb[0].mxu0
        %v1148 = vadd.f32 %v1035, %v1147
        %v1149 = vpop.f32.mrb[0].mxu0
        %v1150 = vadd.f32 %v1037, %v1149
        %1151 = vmatprep.mubr.f32.mxu0 %v459
        %1152 = vmatmul.mubr.f32.gmra.mrb[0].mxu0 %v458
        %v1153 = vpop.f32.mrb[0].mxu0
        %v1154 = vadd.f32 %v1041, %v1153
        %v1155 = vpop.f32.mrb[0].mxu0
        %v1156 = vadd.f32 %v1043, %v1155
        %1157 = vmatprep.mubr.f32.mxu0 %v463
        %1158 = vmatmul.mubr.f32.gmra.mrb[0].mxu0 %v462
        %v1159 = vpop.f32.mrb[0].mxu0
        %v1160 = vadd.f32 %v1047, %v1159
        %v1161 = vpop.f32.mrb[0].mxu0
        %v1162 = vadd.f32 %v1049, %v1161
        %1163 = vmatprep.mubr.f32.mxu0 %v467
        %1164 = vmatmul.mubr.f32.gmra.mrb[0].mxu0 %v466
        %v1165 = vpop.f32.mrb[0].mxu0
        %v1166 = vadd.f32 %v1053, %v1165
        %v1167 = vpop.f32.mrb[0].mxu0
        %v1168 = vadd.f32 %v1055, %v1167
        %1169 = vmatprep.mubr.f32.mxu0 %v471
        %1170 = vmatmul.mubr.f32.gmra.mrb[0].mxu0 %v470
        %v1171 = vpop.f32.mrb[0].mxu0
        %v1172 = vadd.f32 %v1059, %v1171
        %v1173 = vpop.f32.mrb[0].mxu0
        %v1174 = vadd.f32 %v1061, %v1173
        %1175 = vmatprep.mubr.f32.mxu0 %v475
        %1176 = vmatmul.mubr.f32.gmra.mrb[0].mxu0 %v474
        %v1177 = vpop.f32.mrb[0].mxu0
        %v1178 = vadd.f32 %v1065, %v1177
        %v1179 = vpop.f32.mrb[0].mxu0
        %v1180 = vadd.f32 %v1067, %v1179
        %1181 = vmatprep.mubr.f32.mxu0 %v479
        %1182 = vmatmul.mubr.f32.gmra.mrb[0].mxu0 %v478
        %v1183 = vpop.f32.mrb[0].mxu0
        %v1184 = vadd.f32 %v1071, %v1183
        %v1185 = vpop.f32.mrb[0].mxu0
        %v1186 = vadd.f32 %v1073, %v1185
        %1187 = vdwg.mxu0
        %v1188 = vld [vmem:[%s378] sm:$0xff]
        %v1189 = vld [vmem:[%s378 + $0x8] sm:$0xff]
        %v1190 = vld [vmem:[%s378 + $0x10] sm:$0xff]
        %v1191 = vld [vmem:[%s378 + $0x18] sm:$0xff]
        %v1192 = vld [vmem:[%s378 + $0x20] sm:$0xff]
        %v1193 = vld [vmem:[%s378 + $0x28] sm:$0xff]
        %v1194 = vld [vmem:[%s378 + $0x30] sm:$0xff]
        %v1195 = vld [vmem:[%s378 + $0x38] sm:$0xff]
        %v1196 = vld [vmem:[%s387] sm:$0xff]
        %v1197 = vld [vmem:[%s387 + $0x8] sm:$0xff]
        %v1198 = vld [vmem:[%s387 + $0x10] sm:$0xff]
        %v1199 = vld [vmem:[%s387 + $0x18] sm:$0xff]
        %v1200 = vld [vmem:[%s387 + $0x20] sm:$0xff]
        %v1201 = vld [vmem:[%s387 + $0x28] sm:$0xff]
        %v1202 = vld [vmem:[%s387 + $0x30] sm:$0xff]
        %v1203 = vld [vmem:[%s387 + $0x38] sm:$0xff]
        %v1204 = vmul.f32 %v916, %v1188
        %v1205 = vmul.f32 %v922, %v1189
        %v1206 = vmul.f32 %v928, %v1190
        %v1207 = vmul.f32 %v934, %v1191
        %v1208 = vmul.f32 %v940, %v1192
        %v1209 = vmul.f32 %v946, %v1193
        %v1210 = vmul.f32 %v952, %v1194
        %v1211 = vmul.f32 %v958, %v1195
        %1212 = vrot.lane.b32.xlu0 %v916, 64
        %v1213 = vpop.permute.xlu0 %1212
        %1214 = vrot.lane.b32.xlu0 %v922, 64
        %v1215 = vpop.permute.xlu0 %1214
        %1216 = vrot.lane.b32.xlu0 %v928, 64
        %v1217 = vpop.permute.xlu0 %1216
        %1218 = vrot.lane.b32.xlu0 %v934, 64
        %v1219 = vpop.permute.xlu0 %1218
        %1220 = vrot.lane.b32.xlu0 %v940, 64
        %v1221 = vpop.permute.xlu0 %1220
        %1222 = vrot.lane.b32.xlu0 %v946, 64
        %v1223 = vpop.permute.xlu0 %1222
        %1224 = vrot.lane.b32.xlu0 %v952, 64
        %v1225 = vpop.permute.xlu0 %1224
        %1226 = vrot.lane.b32.xlu0 %v958, 64
        %v1227 = vpop.permute.xlu0 %1226
        %v1228 = vmul.f32 %v1213, %v1196
        %v1229 = vmul.f32 %v1215, %v1197
        %v1230 = vmul.f32 %v1217, %v1198
        %v1231 = vmul.f32 %v1219, %v1199
        %v1232 = vmul.f32 %v1221, %v1200
        %v1233 = vmul.f32 %v1223, %v1201
        %v1234 = vmul.f32 %v1225, %v1202
        %v1235 = vmul.f32 %v1227, %v1203
        %v1236 = vadd.f32 %v1204, %v1228
        %v1237 = vadd.f32 %v1205, %v1229
        %v1238 = vadd.f32 %v1206, %v1230
        %v1239 = vadd.f32 %v1207, %v1231
        %v1240 = vadd.f32 %v1208, %v1232
        %v1241 = vadd.f32 %v1209, %v1233
        %v1242 = vadd.f32 %v1210, %v1234
        %v1243 = vadd.f32 %v1211, %v1235
        %1244 = vst [vmem:[%s426] sm:$0xff] %v1236
        %1245 = vst [vmem:[%s426 + $0x8] sm:$0xff] %v1237
        %1246 = vst [vmem:[%s426 + $0x10] sm:$0xff] %v1238
        %1247 = vst [vmem:[%s426 + $0x18] sm:$0xff] %v1239
        %1248 = vst [vmem:[%s426 + $0x20] sm:$0xff] %v1240
        %1249 = vst [vmem:[%s426 + $0x28] sm:$0xff] %v1241
        %1250 = vst [vmem:[%s426 + $0x30] sm:$0xff] %v1242
        %1251 = vst [vmem:[%s426 + $0x38] sm:$0xff] %v1243
        %v1252 = vmul.f32 %v918, %v1188
        %v1253 = vmul.f32 %v924, %v1189
        %v1254 = vmul.f32 %v930, %v1190
        %v1255 = vmul.f32 %v936, %v1191
        %v1256 = vmul.f32 %v942, %v1192
        %v1257 = vmul.f32 %v948, %v1193
        %v1258 = vmul.f32 %v954, %v1194
        %v1259 = vmul.f32 %v960, %v1195
        %1260 = vrot.lane.b32.xlu0 %v918, 64
        %v1261 = vpop.permute.xlu0 %1260
        %1262 = vrot.lane.b32.xlu0 %v924, 64
        %v1263 = vpop.permute.xlu0 %1262
        %1264 = vrot.lane.b32.xlu0 %v930, 64
        %v1265 = vpop.permute.xlu0 %1264
        %1266 = vrot.lane.b32.xlu0 %v936, 64
        %v1267 = vpop.permute.xlu0 %1266
        %1268 = vrot.lane.b32.xlu0 %v942, 64
        %v1269 = vpop.permute.xlu0 %1268
        %1270 = vrot.lane.b32.xlu0 %v948, 64
        %v1271 = vpop.permute.xlu0 %1270
        %1272 = vrot.lane.b32.xlu0 %v954, 64
        %v1273 = vpop.permute.xlu0 %1272
        %1274 = vrot.lane.b32.xlu0 %v960, 64
        %v1275 = vpop.permute.xlu0 %1274
        %v1276 = vmul.f32 %v1261, %v1196
        %v1277 = vmul.f32 %v1263, %v1197
        %v1278 = vmul.f32 %v1265, %v1198
        %v1279 = vmul.f32 %v1267, %v1199
        %v1280 = vmul.f32 %v1269, %v1200
        %v1281 = vmul.f32 %v1271, %v1201
        %v1282 = vmul.f32 %v1273, %v1202
        %v1283 = vmul.f32 %v1275, %v1203
        %v1284 = vadd.f32 %v1252, %v1276
        %v1285 = vadd.f32 %v1253, %v1277
        %v1286 = vadd.f32 %v1254, %v1278
        %v1287 = vadd.f32 %v1255, %v1279
        %v1288 = vadd.f32 %v1256, %v1280
        %v1289 = vadd.f32 %v1257, %v1281
        %v1290 = vadd.f32 %v1258, %v1282
        %v1291 = vadd.f32 %v1259, %v1283
        %s1292 = scalar_lea.vmem %s426, 64 [#allocation10]
        %1293 = vst [vmem:[%s1292] sm:$0xff] %v1284
        %1294 = vst [vmem:[%s1292 + $0x8] sm:$0xff] %v1285
        %1295 = vst [vmem:[%s1292 + $0x10] sm:$0xff] %v1286
        %1296 = vst [vmem:[%s1292 + $0x18] sm:$0xff] %v1287
        %1297 = vst [vmem:[%s1292 + $0x20] sm:$0xff] %v1288
        %1298 = vst [vmem:[%s1292 + $0x28] sm:$0xff] %v1289
        %1299 = vst [vmem:[%s1292 + $0x30] sm:$0xff] %v1290
        %1300 = vst [vmem:[%s1292 + $0x38] sm:$0xff] %v1291
        %v1301 = vmul.f32 %v1142, %v1188
        %v1302 = vmul.f32 %v1148, %v1189
        %v1303 = vmul.f32 %v1154, %v1190
        %v1304 = vmul.f32 %v1160, %v1191
        %v1305 = vmul.f32 %v1166, %v1192
        %v1306 = vmul.f32 %v1172, %v1193
        %v1307 = vmul.f32 %v1178, %v1194
        %v1308 = vmul.f32 %v1184, %v1195
        %1309 = vrot.lane.b32.xlu0 %v1142, 64
        %v1310 = vpop.permute.xlu0 %1309
        %1311 = vrot.lane.b32.xlu0 %v1148, 64
        %v1312 = vpop.permute.xlu0 %1311
        %1313 = vrot.lane.b32.xlu0 %v1154, 64
        %v1314 = vpop.permute.xlu0 %1313
        %1315 = vrot.lane.b32.xlu0 %v1160, 64
        %v1316 = vpop.permute.xlu0 %1315
        %1317 = vrot.lane.b32.xlu0 %v1166, 64
        %v1318 = vpop.permute.xlu0 %1317
        %1319 = vrot.lane.b32.xlu0 %v1172, 64
        %v1320 = vpop.permute.xlu0 %1319
        %1321 = vrot.lane.b32.xlu0 %v1178, 64
        %v1322 = vpop.permute.xlu0 %1321
        %1323 = vrot.lane.b32.xlu0 %v1184, 64
        %v1324 = vpop.permute.xlu0 %1323
        %v1325 = vmul.f32 %v1310, %v1196
        %v1326 = vmul.f32 %v1312, %v1197
        %v1327 = vmul.f32 %v1314, %v1198
        %v1328 = vmul.f32 %v1316, %v1199
        %v1329 = vmul.f32 %v1318, %v1200
        %v1330 = vmul.f32 %v1320, %v1201
        %v1331 = vmul.f32 %v1322, %v1202
        %v1332 = vmul.f32 %v1324, %v1203
        %v1333 = vadd.f32 %v1301, %v1325
        %v1334 = vadd.f32 %v1302, %v1326
        %v1335 = vadd.f32 %v1303, %v1327
        %v1336 = vadd.f32 %v1304, %v1328
        %v1337 = vadd.f32 %v1305, %v1329
        %v1338 = vadd.f32 %v1306, %v1330
        %v1339 = vadd.f32 %v1307, %v1331
        %v1340 = vadd.f32 %v1308, %v1332
        %1341 = vst [vmem:[%s433] sm:$0xff] %v1333
        %1342 = vst [vmem:[%s433 + $0x8] sm:$0xff] %v1334
        %1343 = vst [vmem:[%s433 + $0x10] sm:$0xff] %v1335
        %1344 = vst [vmem:[%s433 + $0x18] sm:$0xff] %v1336
        %1345 = vst [vmem:[%s433 + $0x20] sm:$0xff] %v1337
        %1346 = vst [vmem:[%s433 + $0x28] sm:$0xff] %v1338
        %1347 = vst [vmem:[%s433 + $0x30] sm:$0xff] %v1339
        %1348 = vst [vmem:[%s433 + $0x38] sm:$0xff] %v1340
        %1349 = vst [vmem:[%s440] sm:$0xff] %v1144
        %1350 = vst [vmem:[%s440 + $0x8] sm:$0xff] %v1150
        %1351 = vst [vmem:[%s440 + $0x10] sm:$0xff] %v1156
        %1352 = vst [vmem:[%s440 + $0x18] sm:$0xff] %v1162
        %1353 = vst [vmem:[%s440 + $0x20] sm:$0xff] %v1168
        %1354 = vst [vmem:[%s440 + $0x28] sm:$0xff] %v1174
        %1355 = vst [vmem:[%s440 + $0x30] sm:$0xff] %v1180
        %1356 = vst [vmem:[%s440 + $0x38] sm:$0xff] %v1186
        %s1357 = sand.u32 %s170, 1
        %s1358 = scalar_lea.sflag [#allocation4], %s1357
        %s1359 = sand.u32 %s170, 1
        %s1360 = smul.addr %s1359, 128
        %s1361 = scalar_lea.vmem [#allocation10], %s1360
        %s1362 = sand.u32 %s33, 1
        %s1363 = scalar_lea.sflag [#allocation12], %s1362
        %s1364 = sand.u32 %s200, 1
        %s1365 = smul.addr %s1364, 64
        %s1366 = scalar_lea.vmem [#allocation11], %s1365
        %s1367 = sand.u32 %s33, 1
        %s1368 = scalar_lea.sflag [#allocation12], %s1367
        %s1369 = sand.u32 %s230, 1
        %s1370 = smul.addr %s1369, 64
        %s1371 = scalar_lea.vmem [#allocation13], %s1370
        // Predicated region
        $region53: #{tpu_custom_call.1} parent=35 // pred_check
          %p1372 = pneg %p180
        $region54: #{tpu_custom_call.1} parent=35 // pred_check_branch
          %1374 = sbr.rel (%p1372) target = $region56
        $region55: #{tpu_custom_call.1} parent=35 // pred_region
          #allocation15 [shape = 'u32[6]{0}', space=smem, size = 0x18, scoped, tag = 'DMA stride descriptor']
          %s1375 = smul.u32 2, %s39
          %s1376 = smul.u32 8, %s40
          %s1378 = ssub.s32 2048, 2048
          %1379 = vsyncadd %s1358, %s1378
          %s1380 = smul.addr %s1375, 32
          %s1381 = sadd.s32 %s1376, %s1380
          %s1382 = smul.addr %s38, 128
          %s1383 = sadd.s32 %s1381, %s1382
          %s1384 = smul.addr %s1383, 128
          %s1385 = scalar_lea.hbm %s4, %s1384
          %s1387 = sshll.u32 1, 14
          %s1388 = sxor.u32 4294967295, %s1387
          %s1391 = sshll.u32 7, 18
          %s1392 = sxor.u32 4294967295, %s1391
          %s1393 = sand.u32 0, %s1392
          %s1395 = sor.u32 %s1393, 0
          %s1397 = sshll.u32 3, 24
          %s1398 = sxor.u32 4294967295, %s1397
          %s1399 = sand.u32 %s1395, %s1398
          %s1401 = sor.u32 %s1399, 0
          %s1402 = sshll.u32 %s1361, 4
          %s1403 = int_to_ptr.vmem [resolvable:$true] %s1402
          %1409 = sst [smem:[#allocation15]] 1024
          %s1410 = scalar_lea.smem [#allocation15], 1
          %1411 = sst [smem:[%s1410]] 4096
          %s1412 = scalar_lea.smem [#allocation15], 2
          %1413 = sst [smem:[%s1412]] 8
          %s1414 = scalar_lea.smem [#allocation15], 3
          %1415 = sst [smem:[%s1414]] 128
          %s1416 = scalar_lea.smem [#allocation15], 4
          %1417 = sst [smem:[%s1416]] 128
          %s1418 = scalar_lea.smem [#allocation15], 5
          %1419 = sst [smem:[%s1418]] 8
          %1421 = dma.general %s1403, 2048, %s1385, %s1358, [#allocation14], [#allocation15], %s1401, 0
        $region56: #{tpu_custom_call.1} parent=35 // pred_fallthru
          _
        // Predicated region
        $region57: #{tpu_custom_call.1} parent=35 // pred_check
          %p1422 = pneg %p210
        $region58: #{tpu_custom_call.1} parent=35 // pred_check_branch
          %1424 = sbr.rel (%p1422) target = $region60
        $region59: #{tpu_custom_call.1} parent=35 // pred_region
          %s1425 = smul.u32 8, %s40
          %s1427 = ssub.s32 1024, 1024
          %1428 = vsyncadd %s1363, %s1427
          %s1429 = smul.addr %s39, 32
          %s1430 = sadd.s32 %s1425, %s1429
          %s1431 = smul.addr %s38, 64
          %s1432 = sadd.s32 %s1430, %s1431
          %s1433 = smul.addr %s1432, 128
          %s1434 = scalar_lea.hbm %s5, %s1433
          %s1435 = sshll.u32 %s1366, 4
          %s1436 = int_to_ptr.vmem [resolvable:$true] %s1435
          %1441 = dma.vmem_to_hbm [thread:$0]  %s1436, 1024, %s1434, %s1363, 128, 128, 8
        $region60: #{tpu_custom_call.1} parent=35 // pred_fallthru
          _
        // Predicated region
        $region61: #{tpu_custom_call.1} parent=35 // pred_check
          %p1442 = pneg %p240
        $region62: #{tpu_custom_call.1} parent=35 // pred_check_branch
          %1444 = sbr.rel (%p1442) target = $region64
        $region63: #{tpu_custom_call.1} parent=35 // pred_region
          %s1445 = smul.u32 8, %s40
          %s1447 = ssub.s32 1024, 1024
          %1448 = vsyncadd %s1368, %s1447
          %s1449 = smul.addr %s39, 32
          %s1450 = sadd.s32 %s1445, %s1449
          %s1451 = smul.addr %s38, 64
          %s1452 = sadd.s32 %s1450, %s1451
          %s1453 = smul.addr %s1452, 128
          %s1454 = scalar_lea.hbm %s6, %s1453
          %s1455 = sshll.u32 %s1371, 4
          %s1456 = int_to_ptr.vmem [resolvable:$true] %s1455
          %1461 = dma.vmem_to_hbm [thread:$0]  %s1456, 1024, %s1454, %s1368, 128, 128, 8
        $region64: #{tpu_custom_call.1} parent=35 // pred_fallthru
          _
      $region36: #{tpu_custom_call.1} parent=5 // pred_fallthru
        _
      %p1462 = scmp.le.s32.totalorder 2, %s28
      // Predicated region
      $region65: #{tpu_custom_call.1} parent=5 // pred_check
        %p1463 = pneg %p1462
      $region66: #{tpu_custom_call.1} parent=5 // pred_check_branch
        %1465 = sbr.rel (%p1463) target = $region68
      $region67: #{tpu_custom_call.1} parent=5 // pred_region
        %s1466 = ssub.s32 %s28, 2
        // Predicated region
        $region69: #{tpu_custom_call.1} parent=67 // pred_check
          %p1467 = pneg %p186
        $region70: #{tpu_custom_call.1} parent=67 // pred_check_branch
          %1469 = sbr.rel (%p1467) target = $region72
        $region71: #{tpu_custom_call.1} parent=67 // pred_region
          %s1470 = sand.u32 %s171, 1
          %s1471 = scalar_lea.sflag [#allocation4], %s1470
          %s1472 = sand.u32 %s171, 1
          %s1473 = smul.addr %s1472, 128
          %s1474 = scalar_lea.vmem [#allocation10], %s1473
          %1475 = dma.done %s1471, 2048
        $region72: #{tpu_custom_call.1} parent=67 // pred_fallthru
          _
        // Predicated region
        $region73: #{tpu_custom_call.1} parent=67 // pred_check
          %p1476 = pneg %p216
        $region74: #{tpu_custom_call.1} parent=67 // pred_check_branch
          %1478 = sbr.rel (%p1476) target = $region76
        $region75: #{tpu_custom_call.1} parent=67 // pred_region
          %s1479 = sand.u32 %s34, 1
          %s1480 = scalar_lea.sflag [#allocation12], %s1479
          %s1481 = sand.u32 %s201, 1
          %s1482 = smul.addr %s1481, 64
          %s1483 = scalar_lea.vmem [#allocation11], %s1482
          %1484 = dma.done %s1480, 1024
        $region76: #{tpu_custom_call.1} parent=67 // pred_fallthru
          _
        // Predicated region
        $region77: #{tpu_custom_call.1} parent=67 // pred_check
          %p1485 = pneg %p246
        $region78: #{tpu_custom_call.1} parent=67 // pred_check_branch
          %1487 = sbr.rel (%p1485) target = $region80
        $region79: #{tpu_custom_call.1} parent=67 // pred_region
          %s1488 = sand.u32 %s34, 1
          %s1489 = scalar_lea.sflag [#allocation12], %s1488
          %s1490 = sand.u32 %s231, 1
          %s1491 = smul.addr %s1490, 64
          %s1492 = scalar_lea.vmem [#allocation13], %s1491
          %1493 = dma.done %s1489, 1024
        $region80: #{tpu_custom_call.1} parent=67 // pred_fallthru
          _
      $region68: #{tpu_custom_call.1} parent=5 // pred_fallthru
        _
    $region6: #{tpu_custom_call.1} parent=1 // loop_footer
      %s32 = sadd.s32 1, %s28
    $region7: #{tpu_custom_call.1} parent=1 // loop_footer_branch
      %27 = sbr.rel target = $region3
    $region8: #{tpu_custom_call.1} parent=1 // loop_exit
      _
    %1494 = vsyncpa [#allocation3], 1
    %s1495 = scalar_lea.sflag [#allocation3], 1
    %1496 = vsyncpa %s1495, 1
    %1497 = vsyncpa [#allocation6], 1
    %s1498 = scalar_lea.sflag [#allocation6], 1
    %1499 = vsyncpa %s1498, 1
    %1500 = vsyncpa [#allocation9], 1
    %s1501 = scalar_lea.sflag [#allocation9], 1
    %1502 = vsyncpa %s1501, 1
    %1503 = vsyncpa [#allocation4], 1
    %s1504 = scalar_lea.sflag [#allocation4], 1
    %1505 = vsyncpa %s1504, 1
    %1506 = vsyncpa [#allocation12], 1
    %s1507 = scalar_lea.sflag [#allocation12], 1
    %1508 = vsyncpa %s1507, 1

</llo_original>
